<compile_context>
chip_gen: v6e
topology: v6e:2x2x1
jax: 0.10.0
libtpu: 0.0.40
codegen_flags: <defaults>
</compile_context>

<pallas_src>
import math
from functools import partial

import jax
import jax.numpy as jnp
from jax.experimental import pallas as pl
from jax.experimental.pallas import tpu as pltpu

# ---------------- hyper-parameters (cfg) ----------------
B, T = 2, 8
D, H, FFN, LAYERS = 32, 4, 64, 2
HEAD_DIM = D // H
VOCAB, PAD_IDX = 50, 1
MAX_POS = 64
EMBED_SCALE = math.sqrt(D)          # cfg.no_scale_embedding = False
LN_EPS = 1e-5


# ---------------- fused Pallas kernel ----------------
def _layer_norm(h, g, b):
    mu = jnp.mean(h, axis=-1, keepdims=True)
    var = jnp.mean((h - mu) ** 2, axis=-1, keepdims=True)
    return (h - mu) * jax.lax.rsqrt(var + LN_EPS) * g + b


def fused_encoder_kernel(x_ref, keep_ref, bias_ref,
                         ln_io_ref, ln_l_ref,
                         w_qkv_ref, b_qkv_ref, wo_ref, bo_ref,
                         w1_ref, b1_ref, w2_ref, b2_ref,
                         o_ref, *, num_layers, num_heads, head_dim, embed_dim):
    """Whole TransformerEncoderBase stack (pre-LN layers, inference).

    Activations are kept flat as [B*T, D]; attention treats all B*T tokens as one
    key/query set and the precomputed additive bias masks padded and
    cross-sequence keys, so per-(batch,head) structure only shows up as the
    leading batch axis (= heads) of two batched dot_generals.
    """
    n_tok = x_ref.shape[0]                        # B*T
    x = x_ref[...].astype(jnp.float32)            # [BT, D]  (scale*tok + pos)
    keep = keep_ref[...]                          # [BT, 1]  1.0 where NOT padding
    ln_io = ln_io_ref[...]                        # [4, D]   (emb_g, emb_b, final_g, final_b)

    # Hoist the attention-bias broadcast ONCE (reused by every layer / head).
    # bias[n, m] = 0 if key m is a non-pad token of the same sequence as query n,
    # else -1e9.  Shape [H, BT, BT].
    bias_h = jnp.broadcast_to(bias_ref[...][None, :, :], (num_heads, n_tok, n_tok))

    # layernorm_embedding (dropout = identity at inference), then zero padded tokens.
    x = _layer_norm(x, ln_io[0:1], ln_io[1:2]) * keep

    for l in range(num_layers):                   # unrolled (LAYERS = 2)
        ln_l = ln_l_ref[l]                        # [4, D]
        w_qkv_l = w_qkv_ref[l]                    # [D, 3D] bf16 (1/sqrt(hd) folded in Wq)
        mm = w_qkv_l.dtype

        # ---- self-attention block (normalize_before=True) ----
        residual = x
        h = _layer_norm(x, ln_l[0:1], ln_l[1:2])
        # single 2-D QKV matmul over all tokens
        qkv = jnp.dot(h.astype(mm), w_qkv_l,
                      preferred_element_type=jnp.float32) + b_qkv_ref[l]   # [BT, 3D]

        # split heads with static lane slices, stack heads into a leading batch axis
        q = jnp.stack([qkv[:, hh * head_dim:(hh + 1) * head_dim]
                       for hh in range(num_heads)], axis=0)                # [H, BT, hd]
        k = jnp.stack([qkv[:, embed_dim + hh * head_dim:
                            embed_dim + (hh + 1) * head_dim]
                       for hh in range(num_heads)], axis=0)                # [H, BT, hd]
        v = jnp.stack([qkv[:, 2 * embed_dim + hh * head_dim:
                            2 * embed_dim + (hh + 1) * head_dim]
                       for hh in range(num_heads)], axis=0)                # [H, BT, hd]

        # all-heads scores / softmax / context: two batched dots (batch = heads)
        s = jnp.einsum('hnd,hmd->hnm', q.astype(mm), k.astype(mm),
                       preferred_element_type=jnp.float32) + bias_h        # [H, BT, BT]
        s = s - jnp.max(s, axis=-1, keepdims=True)
        p = jnp.exp(s)
        # denominator >= 1 (max element contributes exp(0)=1) -> no NaN even for
        # fully padded rows; approx reciprocal runs on the EUP slot.
        p = p * pl.reciprocal(jnp.sum(p, axis=-1, keepdims=True), approx=True)
        ctx = jnp.einsum('hnm,hmd->hnd', p.astype(mm), v.astype(mm),
                         preferred_element_type=jnp.float32)               # [H, BT, hd]

        # lane-concat heads, then ONE output-projection matmul
        ctx2d = jnp.concatenate([ctx[hh] for hh in range(num_heads)], axis=-1)  # [BT, D]
        attn = jnp.dot(ctx2d.astype(mm), wo_ref[l],
                       preferred_element_type=jnp.float32) + bo_ref[l]     # [BT, D]
        x = residual + attn                       # dropout = identity (eval)

        # ---- feed-forward block ----
        residual = x
        h = _layer_norm(x, ln_l[2:3], ln_l[3:4])
        hf = jnp.dot(h.astype(mm), w1_ref[l],
                     preferred_element_type=jnp.float32) + b1_ref[l]       # [BT, FFN]
        hf = jnp.maximum(hf, 0.0)                 # ReLU activation_fn
        ho = jnp.dot(hf.astype(mm), w2_ref[l],
                     preferred_element_type=jnp.float32) + b2_ref[l]       # [BT, D]
        x = residual + ho

    # final layer norm (encoder_normalize_before=True)
    x = _layer_norm(x, ln_io[2:3], ln_io[3:4])
    o_ref[...] = x.astype(o_ref.dtype)


# ---------------- pallas_call wrapper ----------------
_VMEM = pl.BlockSpec(memory_space=pltpu.MemorySpace.VMEM)


def pallas_fused_encoder(x2d, keep_flat, attn_bias, p):
    args = (x2d, keep_flat, attn_bias,
            p['ln_io'], p['ln_layers'],
            p['w_qkv'], p['b_qkv'], p['wo'], p['bo'],
            p['w1'], p['b1'], p['w2'], p['b2'])
    kernel = partial(fused_encoder_kernel, num_layers=LAYERS, num_heads=H,
                     head_dim=HEAD_DIM, embed_dim=D)
    return pl.pallas_call(
        kernel,
        out_shape=jax.ShapeDtypeStruct(x2d.shape, x2d.dtype),
        in_specs=[_VMEM] * len(args),
        out_specs=_VMEM,
    )(*args)


# ---------------- plain-JAX glue (embedding / positions / params) ----------------
def sinusoidal_embedding(num_embeddings, embedding_dim, padding_idx):
    """fairseq SinusoidalPositionalEmbedding.get_embedding"""
    half_dim = embedding_dim // 2
    scale = math.log(10000.0) / (half_dim - 1)
    inv = jnp.exp(jnp.arange(half_dim, dtype=jnp.float32) * -scale)
    ang = jnp.arange(num_embeddings, dtype=jnp.float32)[:, None] * inv[None, :]
    emb = jnp.concatenate([jnp.sin(ang), jnp.cos(ang)], axis=1)
    if embedding_dim % 2 == 1:
        emb = jnp.concatenate(
            [emb, jnp.zeros((num_embeddings, 1), jnp.float32)], axis=1)
    emb = emb.at[padding_idx, :].set(0.0)
    return emb


def make_positions(tokens, padding_idx):
    """fairseq utils.make_positions"""
    mask = (tokens != padding_idx).astype(jnp.int32)
    return jnp.cumsum(mask, axis=1) * mask + padding_idx


def init_params(key):
    keys = jax.random.split(key, 1 + LAYERS)
    embed = jax.random.normal(keys[0], (VOCAB, D), jnp.float32) * (D ** -0.5)
    ln_pair = jnp.concatenate([jnp.ones((1, D), jnp.float32),
                               jnp.zeros((1, D), jnp.float32)], axis=0)   # (g, b)
    params = {
        'embed': embed.at[PAD_IDX].set(0.0),          # nn.Embedding padding_idx
        'pos_table': sinusoidal_embedding(MAX_POS + PAD_IDX + 1, D, PAD_IDX),
        'ln_io': jnp.concatenate([ln_pair, ln_pair], axis=0),   # [4, D]
    }
    s = 1.0 / math.sqrt(D)
    attn_scale = HEAD_DIM ** -0.5
    ln_layers, w_qkv, b_qkv, wo_l, bo, w1, b1, w2, b2 = ([] for _ in range(9))
    for i in range(LAYERS):
        lk = jax.random.split(keys[1 + i], 8)
        wq = jax.random.normal(lk[0], (D, D), jnp.float32) * s       # [out, in]
        bq = jax.random.normal(lk[1], (D,), jnp.float32) * 0.02
        wk = jax.random.normal(lk[2], (D, D), jnp.float32) * s
        bk = jnp.zeros((D,), jnp.float32)
        wv = jax.random.normal(lk[3], (D, D), jnp.float32) * s
        bv = jax.random.normal(lk[4], (D,), jnp.float32) * 0.02
        wo = jax.random.normal(lk[5], (D, D), jnp.float32) * s

        ln_layers.append(jnp.concatenate([ln_pair, ln_pair], axis=0))        # [4, D]
        # fused, input-major QKV weight with 1/sqrt(head_dim) folded into the Q part
        w_qkv.append(jnp.concatenate(
            [(wq * attn_scale).T, wk.T, wv.T], axis=1))                      # [D, 3D]
        b_qkv.append(jnp.concatenate([bq * attn_scale, bk, bv])[None, :])    # [1, 3D]
        wo_l.append(wo.T)                                                    # [D, D] input-major
        bo.append(jnp.zeros((1, D), jnp.float32))
        w1.append((jax.random.normal(lk[6], (FFN, D), jnp.float32) * s).T)   # [D, FFN]
        b1.append(jnp.zeros((1, FFN), jnp.float32))
        w2.append((jax.random.normal(lk[7], (D, FFN), jnp.float32)
                   * (1.0 / math.sqrt(FFN))).T)                              # [FFN, D]
        b2.append(jnp.zeros((1, D), jnp.float32))

    mm_dtype = jnp.bfloat16       # MXU operands stored in bf16; element-wise math stays f32
    params.update({
        'ln_layers': jnp.stack(ln_layers),                 # [L, 4, D]
        'w_qkv': jnp.stack(w_qkv).astype(mm_dtype),        # [L, D, 3D]
        'b_qkv': jnp.stack(b_qkv),                         # [L, 1, 3D]
        'wo': jnp.stack(wo_l).astype(mm_dtype),            # [L, D, D]
        'bo': jnp.stack(bo),                               # [L, 1, D]
        'w1': jnp.stack(w1).astype(mm_dtype),              # [L, D, FFN]
        'b1': jnp.stack(b1),                               # [L, 1, FFN]
        'w2': jnp.stack(w2).astype(mm_dtype),              # [L, FFN, D]
        'b2': jnp.stack(b2),                               # [L, 1, D]
    })
    return params


def transformer_encoder_forward(src_tokens, params, return_all_hiddens=False):
    """Mirrors TransformerEncoderBase.forward_scriptable (inference semantics)."""
    pad_mask = (src_tokens == PAD_IDX)                    # encoder_padding_mask [B, T]
    tok_emb = params['embed'][src_tokens]                 # embedding gather (JAX glue)
    embed = EMBED_SCALE * tok_emb                         # encoder_embedding
    positions = make_positions(src_tokens, PAD_IDX)
    x = embed + params['pos_table'][positions]            # + positional embedding

    keep = (~pad_mask).astype(jnp.float32)                # [B, T] 1.0 where NOT padding
    keep_flat = keep.reshape(B * T, 1)                    # [BT, 1]
    # Additive attention bias over the flattened B*T token axis: forbid padded keys
    # and cross-sequence keys.  [BT, BT]
    batch_id = jnp.repeat(jnp.arange(B, dtype=jnp.int32), T)
    same_seq = (batch_id[:, None] == batch_id[None, :]).astype(jnp.float32)
    allow = same_seq * keep.reshape(B * T)[None, :]
    attn_bias = (1.0 - allow) * jnp.float32(-1e9)

    # Single fused Pallas call: embedding LN, pad zeroing, all layers, final LN.
    y2d = pallas_fused_encoder(x.reshape(B * T, D), keep_flat, attn_bias, params)
    y = y2d.reshape(B, T, D)

    encoder_states = []
    # TODO(synk): return_all_hiddens (per-layer hidden states) is not emitted by the
    # fused single-kernel path; only the final encoder output is produced.

    y = jnp.transpose(y, (1, 0, 2))                       # [T, B, D] like x.transpose(0,1)
    return y, pad_mask, embed, encoder_states


if __name__ == "__main__":
    key = jax.random.PRNGKey(0)
    pkey, tkey = jax.random.split(key)
    params = init_params(pkey)

    src_tokens = jax.random.randint(tkey, (B, T), 2, VOCAB, dtype=jnp.int32)
    src_tokens = src_tokens.at[1, T - 2:].set(PAD_IDX)    # introduce padding

    fwd = jax.jit(transformer_encoder_forward)
    x, pad_mask, enc_emb, states = fwd(src_tokens, params)
    jax.block_until_ready(x)

    assert x.shape == (T, B, D)
    assert pad_mask.shape == (B, T)
    assert enc_emb.shape == (B, T, D)
    assert not bool(jnp.any(jnp.isnan(x)))
    print("KERNEL_OK")
</pallas_src>

<mosaic_0001>
module attributes {stable_mosaic.version = 11 : i64} {
  func.func @fused_encoder_kernel(%arg0: memref<16x32xf32, #tpu.memory_space<vmem>>, %arg1: memref<16x1xf32, #tpu.memory_space<vmem>>, %arg2: memref<16x16xf32, #tpu.memory_space<vmem>>, %arg3: memref<4x32xf32, #tpu.memory_space<vmem>>, %arg4: memref<2x4x32xf32, #tpu.memory_space<vmem>>, %arg5: memref<2x32x96xbf16, #tpu.memory_space<vmem>>, %arg6: memref<2x1x96xf32, #tpu.memory_space<vmem>>, %arg7: memref<2x32x32xbf16, #tpu.memory_space<vmem>>, %arg8: memref<2x1x32xf32, #tpu.memory_space<vmem>>, %arg9: memref<2x32x64xbf16, #tpu.memory_space<vmem>>, %arg10: memref<2x1x64xf32, #tpu.memory_space<vmem>>, %arg11: memref<2x64x32xbf16, #tpu.memory_space<vmem>>, %arg12: memref<2x1x32xf32, #tpu.memory_space<vmem>>, %arg13: memref<16x32xf32, #tpu.memory_space<vmem>>) attributes {dimension_semantics = [], scalar_prefetch = 0 : i64, scratch_operands = 0 : i64, tpu.core_type = #tpu.core_type<tc>} {
    %c0 = arith.constant 0 : index
    %c0_0 = arith.constant 0 : index
    %0 = vector.load %arg0[%c0, %c0_0] : memref<16x32xf32, #tpu.memory_space<vmem>>, vector<16x32xf32>
    %c0_1 = arith.constant 0 : index
    %c0_2 = arith.constant 0 : index
    %1 = vector.load %arg1[%c0_1, %c0_2] : memref<16x1xf32, #tpu.memory_space<vmem>>, vector<16x1xf32>
    %c0_3 = arith.constant 0 : index
    %c0_4 = arith.constant 0 : index
    %2 = vector.load %arg3[%c0_3, %c0_4] : memref<4x32xf32, #tpu.memory_space<vmem>>, vector<4x32xf32>
    %c0_5 = arith.constant 0 : index
    %c0_6 = arith.constant 0 : index
    %3 = vector.load %arg2[%c0_5, %c0_6] : memref<16x16xf32, #tpu.memory_space<vmem>>, vector<16x16xf32>
    %4 = vector.shape_cast %3 : vector<16x16xf32> to vector<1x16x16xf32>
    %5 = vector.shape_cast %4 : vector<1x16x16xf32> to vector<1x16x16xf32>
    %6 = vector.broadcast %5 : vector<1x16x16xf32> to vector<4x16x16xf32>
    %7 = vector.extract_strided_slice %2 {offsets = [0, 0], sizes = [1, 32], strides = [1, 1]} : vector<4x32xf32> to vector<1x32xf32>
    %8 = vector.extract_strided_slice %2 {offsets = [1, 0], sizes = [1, 32], strides = [1, 1]} : vector<4x32xf32> to vector<1x32xf32>
    %cst = arith.constant dense<0.000000e+00> : vector<16xf32>
    %9 = vector.multi_reduction <add>, %0, %cst [1] : vector<16x32xf32> to vector<16xf32>
    %10 = vector.shape_cast %9 : vector<16xf32> to vector<16x1xf32>
    %cst_7 = arith.constant 3.200000e+01 : f32
    %11 = vector.broadcast %cst_7 : f32 to vector<16x1xf32>
    %12 = arith.divf %10, %11 : vector<16x1xf32>
    %13 = vector.broadcast %12 : vector<16x1xf32> to vector<16x32xf32>
    %14 = arith.subf %0, %13 : vector<16x32xf32>
    %15 = arith.mulf %14, %14 : vector<16x32xf32>
    %cst_8 = arith.constant dense<0.000000e+00> : vector<16xf32>
    %16 = vector.multi_reduction <add>, %15, %cst_8 [1] : vector<16x32xf32> to vector<16xf32>
    %17 = vector.shape_cast %16 : vector<16xf32> to vector<16x1xf32>
    %cst_9 = arith.constant 3.200000e+01 : f32
    %18 = vector.broadcast %cst_9 : f32 to vector<16x1xf32>
    %19 = arith.divf %17, %18 : vector<16x1xf32>
    %20 = vector.broadcast %12 : vector<16x1xf32> to vector<16x32xf32>
    %21 = arith.subf %0, %20 : vector<16x32xf32>
    %cst_10 = arith.constant 9.99999974E-6 : f32
    %22 = vector.broadcast %cst_10 : f32 to vector<16x1xf32>
    %23 = arith.addf %19, %22 : vector<16x1xf32>
    %24 = math.rsqrt %23 : vector<16x1xf32>
    %25 = vector.broadcast %24 : vector<16x1xf32> to vector<16x32xf32>
    %26 = arith.mulf %21, %25 : vector<16x32xf32>
    %27 = vector.broadcast %7 : vector<1x32xf32> to vector<16x32xf32>
    %28 = arith.mulf %26, %27 : vector<16x32xf32>
    %29 = vector.broadcast %8 : vector<1x32xf32> to vector<16x32xf32>
    %30 = arith.addf %28, %29 : vector<16x32xf32>
    %31 = vector.broadcast %1 : vector<16x1xf32> to vector<16x32xf32>
    %32 = arith.mulf %30, %31 : vector<16x32xf32>
    %c0_11 = arith.constant 0 : index
    %c0_12 = arith.constant 0 : index
    %c0_13 = arith.constant 0 : index
    %33 = vector.load %arg4[%c0_11, %c0_12, %c0_13] : memref<2x4x32xf32, #tpu.memory_space<vmem>>, vector<1x4x32xf32>
    %34 = vector.shape_cast %33 : vector<1x4x32xf32> to vector<4x32xf32>
    %c0_14 = arith.constant 0 : index
    %c0_15 = arith.constant 0 : index
    %c0_16 = arith.constant 0 : index
    %35 = vector.load %arg5[%c0_14, %c0_15, %c0_16] : memref<2x32x96xbf16, #tpu.memory_space<vmem>>, vector<1x32x96xbf16>
    %36 = vector.shape_cast %35 : vector<1x32x96xbf16> to vector<32x96xbf16>
    %37 = vector.extract_strided_slice %34 {offsets = [0, 0], sizes = [1, 32], strides = [1, 1]} : vector<4x32xf32> to vector<1x32xf32>
    %38 = vector.extract_strided_slice %34 {offsets = [1, 0], sizes = [1, 32], strides = [1, 1]} : vector<4x32xf32> to vector<1x32xf32>
    %cst_17 = arith.constant dense<0.000000e+00> : vector<16xf32>
    %39 = vector.multi_reduction <add>, %32, %cst_17 [1] : vector<16x32xf32> to vector<16xf32>
    %40 = vector.shape_cast %39 : vector<16xf32> to vector<16x1xf32>
    %cst_18 = arith.constant 3.200000e+01 : f32
    %41 = vector.broadcast %cst_18 : f32 to vector<16x1xf32>
    %42 = arith.divf %40, %41 : vector<16x1xf32>
    %43 = vector.broadcast %42 : vector<16x1xf32> to vector<16x32xf32>
    %44 = arith.subf %32, %43 : vector<16x32xf32>
    %45 = arith.mulf %44, %44 : vector<16x32xf32>
    %cst_19 = arith.constant dense<0.000000e+00> : vector<16xf32>
    %46 = vector.multi_reduction <add>, %45, %cst_19 [1] : vector<16x32xf32> to vector<16xf32>
    %47 = vector.shape_cast %46 : vector<16xf32> to vector<16x1xf32>
    %cst_20 = arith.constant 3.200000e+01 : f32
    %48 = vector.broadcast %cst_20 : f32 to vector<16x1xf32>
    %49 = arith.divf %47, %48 : vector<16x1xf32>
    %50 = vector.broadcast %42 : vector<16x1xf32> to vector<16x32xf32>
    %51 = arith.subf %32, %50 : vector<16x32xf32>
    %cst_21 = arith.constant 9.99999974E-6 : f32
    %52 = vector.broadcast %cst_21 : f32 to vector<16x1xf32>
    %53 = arith.addf %49, %52 : vector<16x1xf32>
    %54 = math.rsqrt %53 : vector<16x1xf32>
    %55 = vector.broadcast %54 : vector<16x1xf32> to vector<16x32xf32>
    %56 = arith.mulf %51, %55 : vector<16x32xf32>
    %57 = vector.broadcast %37 : vector<1x32xf32> to vector<16x32xf32>
    %58 = arith.mulf %56, %57 : vector<16x32xf32>
    %59 = vector.broadcast %38 : vector<1x32xf32> to vector<16x32xf32>
    %60 = arith.addf %58, %59 : vector<16x32xf32>
    %61 = arith.truncf %60 : vector<16x32xf32> to vector<16x32xbf16>
    %cst_22 = arith.constant dense<0.000000e+00> : vector<16x96xf32>
    %62 = tpu.matmul %61, %36, %cst_22 {dimension_numbers = #tpu.dot_dimension_numbers<[1], [0], [0], [1], [0, 0, 1, 1], [], []>} : vector<16x32xbf16>, vector<32x96xbf16>, vector<16x96xf32> -> vector<16x96xf32>
    %c0_23 = arith.constant 0 : index
    %c0_24 = arith.constant 0 : index
    %c0_25 = arith.constant 0 : index
    %63 = vector.load %arg6[%c0_23, %c0_24, %c0_25] : memref<2x1x96xf32, #tpu.memory_space<vmem>>, vector<1x1x96xf32>
    %64 = vector.shape_cast %63 : vector<1x1x96xf32> to vector<1x96xf32>
    %65 = vector.broadcast %64 : vector<1x96xf32> to vector<16x96xf32>
    %66 = arith.addf %62, %65 : vector<16x96xf32>
    %67 = vector.extract_strided_slice %66 {offsets = [0, 0], sizes = [16, 8], strides = [1, 1]} : vector<16x96xf32> to vector<16x8xf32>
    %68 = vector.extract_strided_slice %66 {offsets = [0, 8], sizes = [16, 8], strides = [1, 1]} : vector<16x96xf32> to vector<16x8xf32>
    %69 = vector.extract_strided_slice %66 {offsets = [0, 16], sizes = [16, 8], strides = [1, 1]} : vector<16x96xf32> to vector<16x8xf32>
    %70 = vector.extract_strided_slice %66 {offsets = [0, 24], sizes = [16, 8], strides = [1, 1]} : vector<16x96xf32> to vector<16x8xf32>
    %71 = vector.shape_cast %67 : vector<16x8xf32> to vector<1x16x8xf32>
    %72 = vector.shape_cast %68 : vector<16x8xf32> to vector<1x16x8xf32>
    %73 = vector.shape_cast %69 : vector<16x8xf32> to vector<1x16x8xf32>
    %74 = vector.shape_cast %70 : vector<16x8xf32> to vector<1x16x8xf32>
    %75 = tpu.concatenate %71, %72, %73, %74 in 0 : vector<1x16x8xf32>, vector<1x16x8xf32>, vector<1x16x8xf32>, vector<1x16x8xf32> -> vector<4x16x8xf32>
    %76 = vector.extract_strided_slice %66 {offsets = [0, 32], sizes = [16, 8], strides = [1, 1]} : vector<16x96xf32> to vector<16x8xf32>
    %77 = vector.extract_strided_slice %66 {offsets = [0, 40], sizes = [16, 8], strides = [1, 1]} : vector<16x96xf32> to vector<16x8xf32>
    %78 = vector.extract_strided_slice %66 {offsets = [0, 48], sizes = [16, 8], strides = [1, 1]} : vector<16x96xf32> to vector<16x8xf32>
    %79 = vector.extract_strided_slice %66 {offsets = [0, 56], sizes = [16, 8], strides = [1, 1]} : vector<16x96xf32> to vector<16x8xf32>
    %80 = vector.shape_cast %76 : vector<16x8xf32> to vector<1x16x8xf32>
    %81 = vector.shape_cast %77 : vector<16x8xf32> to vector<1x16x8xf32>
    %82 = vector.shape_cast %78 : vector<16x8xf32> to vector<1x16x8xf32>
    %83 = vector.shape_cast %79 : vector<16x8xf32> to vector<1x16x8xf32>
    %84 = tpu.concatenate %80, %81, %82, %83 in 0 : vector<1x16x8xf32>, vector<1x16x8xf32>, vector<1x16x8xf32>, vector<1x16x8xf32> -> vector<4x16x8xf32>
    %85 = vector.extract_strided_slice %66 {offsets = [0, 64], sizes = [16, 8], strides = [1, 1]} : vector<16x96xf32> to vector<16x8xf32>
    %86 = vector.extract_strided_slice %66 {offsets = [0, 72], sizes = [16, 8], strides = [1, 1]} : vector<16x96xf32> to vector<16x8xf32>
    %87 = vector.extract_strided_slice %66 {offsets = [0, 80], sizes = [16, 8], strides = [1, 1]} : vector<16x96xf32> to vector<16x8xf32>
    %88 = vector.extract_strided_slice %66 {offsets = [0, 88], sizes = [16, 8], strides = [1, 1]} : vector<16x96xf32> to vector<16x8xf32>
    %89 = vector.shape_cast %85 : vector<16x8xf32> to vector<1x16x8xf32>
    %90 = vector.shape_cast %86 : vector<16x8xf32> to vector<1x16x8xf32>
    %91 = vector.shape_cast %87 : vector<16x8xf32> to vector<1x16x8xf32>
    %92 = vector.shape_cast %88 : vector<16x8xf32> to vector<1x16x8xf32>
    %93 = tpu.concatenate %89, %90, %91, %92 in 0 : vector<1x16x8xf32>, vector<1x16x8xf32>, vector<1x16x8xf32>, vector<1x16x8xf32> -> vector<4x16x8xf32>
    %94 = arith.truncf %75 : vector<4x16x8xf32> to vector<4x16x8xbf16>
    %95 = arith.truncf %84 : vector<4x16x8xf32> to vector<4x16x8xbf16>
    "tpu.trace_start"() <{level = 10 : i32, message = "hnd,hmd->hnm"}> : () -> ()
    %cst_26 = arith.constant dense<0.000000e+00> : vector<4x16x16xf32>
    %96 = tpu.matmul %94, %95, %cst_26 {dimension_numbers = #tpu.dot_dimension_numbers<[2], [2], [1], [1], [0, 0, 0, 1, 1, 1], [0], [0]>} : vector<4x16x8xbf16>, vector<4x16x8xbf16>, vector<4x16x16xf32> -> vector<4x16x16xf32>
    "tpu.trace_stop"() : () -> ()
    %97 = arith.addf %96, %6 : vector<4x16x16xf32>
    %cst_27 = arith.constant dense<0xFF800000> : vector<4x16xf32>
    %98 = vector.multi_reduction <maximumf>, %97, %cst_27 [2] : vector<4x16x16xf32> to vector<4x16xf32>
    %99 = vector.shape_cast %98 : vector<4x16xf32> to vector<4x16x1xf32>
    %100 = vector.broadcast %99 : vector<4x16x1xf32> to vector<4x16x16xf32>
    %101 = arith.subf %97, %100 : vector<4x16x16xf32>
    %102 = math.exp %101 : vector<4x16x16xf32>
    %cst_28 = arith.constant dense<0.000000e+00> : vector<4x16xf32>
    %103 = vector.multi_reduction <add>, %102, %cst_28 [2] : vector<4x16x16xf32> to vector<4x16xf32>
    %104 = vector.shape_cast %103 : vector<4x16xf32> to vector<4x16x1xf32>
    %105 = tpu.reciprocal %104 {approx = true} : vector<4x16x1xf32> -> vector<4x16x1xf32>
    %106 = vector.broadcast %105 : vector<4x16x1xf32> to vector<4x16x16xf32>
    %107 = arith.mulf %102, %106 : vector<4x16x16xf32>
    %108 = arith.truncf %107 : vector<4x16x16xf32> to vector<4x16x16xbf16>
    %109 = arith.truncf %93 : vector<4x16x8xf32> to vector<4x16x8xbf16>
    "tpu.trace_start"() <{level = 10 : i32, message = "hnm,hmd->hnd"}> : () -> ()
    %cst_29 = arith.constant dense<0.000000e+00> : vector<4x16x8xf32>
    %110 = tpu.matmul %108, %109, %cst_29 {dimension_numbers = #tpu.dot_dimension_numbers<[2], [1], [1], [2], [0, 0, 0, 1, 1, 2], [0], [0]>} : vector<4x16x16xbf16>, vector<4x16x8xbf16>, vector<4x16x8xf32> -> vector<4x16x8xf32>
    "tpu.trace_stop"() : () -> ()
    %111 = vector.extract_strided_slice %110 {offsets = [0, 0, 0], sizes = [1, 16, 8], strides = [1, 1, 1]} : vector<4x16x8xf32> to vector<1x16x8xf32>
    %112 = vector.shape_cast %111 : vector<1x16x8xf32> to vector<16x8xf32>
    %113 = vector.extract_strided_slice %110 {offsets = [1, 0, 0], sizes = [1, 16, 8], strides = [1, 1, 1]} : vector<4x16x8xf32> to vector<1x16x8xf32>
    %114 = vector.shape_cast %113 : vector<1x16x8xf32> to vector<16x8xf32>
    %115 = vector.extract_strided_slice %110 {offsets = [2, 0, 0], sizes = [1, 16, 8], strides = [1, 1, 1]} : vector<4x16x8xf32> to vector<1x16x8xf32>
    %116 = vector.shape_cast %115 : vector<1x16x8xf32> to vector<16x8xf32>
    %117 = vector.extract_strided_slice %110 {offsets = [3, 0, 0], sizes = [1, 16, 8], strides = [1, 1, 1]} : vector<4x16x8xf32> to vector<1x16x8xf32>
    %118 = vector.shape_cast %117 : vector<1x16x8xf32> to vector<16x8xf32>
    %119 = tpu.concatenate %112, %114, %116, %118 in 1 : vector<16x8xf32>, vector<16x8xf32>, vector<16x8xf32>, vector<16x8xf32> -> vector<16x32xf32>
    %120 = arith.truncf %119 : vector<16x32xf32> to vector<16x32xbf16>
    %c0_30 = arith.constant 0 : index
    %c0_31 = arith.constant 0 : index
    %c0_32 = arith.constant 0 : index
    %121 = vector.load %arg7[%c0_30, %c0_31, %c0_32] : memref<2x32x32xbf16, #tpu.memory_space<vmem>>, vector<1x32x32xbf16>
    %122 = vector.shape_cast %121 : vector<1x32x32xbf16> to vector<32x32xbf16>
    %cst_33 = arith.constant dense<0.000000e+00> : vector<16x32xf32>
    %123 = tpu.matmul %120, %122, %cst_33 {dimension_numbers = #tpu.dot_dimension_numbers<[1], [0], [0], [1], [0, 0, 1, 1], [], []>} : vector<16x32xbf16>, vector<32x32xbf16>, vector<16x32xf32> -> vector<16x32xf32>
    %c0_34 = arith.constant 0 : index
    %c0_35 = arith.constant 0 : index
    %c0_36 = arith.constant 0 : index
    %124 = vector.load %arg8[%c0_34, %c0_35, %c0_36] : memref<2x1x32xf32, #tpu.memory_space<vmem>>, vector<1x1x32xf32>
    %125 = vector.shape_cast %124 : vector<1x1x32xf32> to vector<1x32xf32>
    %126 = vector.broadcast %125 : vector<1x32xf32> to vector<16x32xf32>
    %127 = arith.addf %123, %126 : vector<16x32xf32>
    %128 = arith.addf %32, %127 : vector<16x32xf32>
    %129 = vector.extract_strided_slice %34 {offsets = [2, 0], sizes = [1, 32], strides = [1, 1]} : vector<4x32xf32> to vector<1x32xf32>
    %130 = vector.extract_strided_slice %34 {offsets = [3, 0], sizes = [1, 32], strides = [1, 1]} : vector<4x32xf32> to vector<1x32xf32>
    %cst_37 = arith.constant dense<0.000000e+00> : vector<16xf32>
    %131 = vector.multi_reduction <add>, %128, %cst_37 [1] : vector<16x32xf32> to vector<16xf32>
    %132 = vector.shape_cast %131 : vector<16xf32> to vector<16x1xf32>
    %cst_38 = arith.constant 3.200000e+01 : f32
    %133 = vector.broadcast %cst_38 : f32 to vector<16x1xf32>
    %134 = arith.divf %132, %133 : vector<16x1xf32>
    %135 = vector.broadcast %134 : vector<16x1xf32> to vector<16x32xf32>
    %136 = arith.subf %128, %135 : vector<16x32xf32>
    %137 = arith.mulf %136, %136 : vector<16x32xf32>
    %cst_39 = arith.constant dense<0.000000e+00> : vector<16xf32>
    %138 = vector.multi_reduction <add>, %137, %cst_39 [1] : vector<16x32xf32> to vector<16xf32>
    %139 = vector.shape_cast %138 : vector<16xf32> to vector<16x1xf32>
    %cst_40 = arith.constant 3.200000e+01 : f32
    %140 = vector.broadcast %cst_40 : f32 to vector<16x1xf32>
    %141 = arith.divf %139, %140 : vector<16x1xf32>
    %142 = vector.broadcast %134 : vector<16x1xf32> to vector<16x32xf32>
    %143 = arith.subf %128, %142 : vector<16x32xf32>
    %cst_41 = arith.constant 9.99999974E-6 : f32
    %144 = vector.broadcast %cst_41 : f32 to vector<16x1xf32>
    %145 = arith.addf %141, %144 : vector<16x1xf32>
    %146 = math.rsqrt %145 : vector<16x1xf32>
    %147 = vector.broadcast %146 : vector<16x1xf32> to vector<16x32xf32>
    %148 = arith.mulf %143, %147 : vector<16x32xf32>
    %149 = vector.broadcast %129 : vector<1x32xf32> to vector<16x32xf32>
    %150 = arith.mulf %148, %149 : vector<16x32xf32>
    %151 = vector.broadcast %130 : vector<1x32xf32> to vector<16x32xf32>
    %152 = arith.addf %150, %151 : vector<16x32xf32>
    %153 = arith.truncf %152 : vector<16x32xf32> to vector<16x32xbf16>
    %c0_42 = arith.constant 0 : index
    %c0_43 = arith.constant 0 : index
    %c0_44 = arith.constant 0 : index
    %154 = vector.load %arg9[%c0_42, %c0_43, %c0_44] : memref<2x32x64xbf16, #tpu.memory_space<vmem>>, vector<1x32x64xbf16>
    %155 = vector.shape_cast %154 : vector<1x32x64xbf16> to vector<32x64xbf16>
    %cst_45 = arith.constant dense<0.000000e+00> : vector<16x64xf32>
    %156 = tpu.matmul %153, %155, %cst_45 {dimension_numbers = #tpu.dot_dimension_numbers<[1], [0], [0], [1], [0, 0, 1, 1], [], []>} : vector<16x32xbf16>, vector<32x64xbf16>, vector<16x64xf32> -> vector<16x64xf32>
    %c0_46 = arith.constant 0 : index
    %c0_47 = arith.constant 0 : index
    %c0_48 = arith.constant 0 : index
    %157 = vector.load %arg10[%c0_46, %c0_47, %c0_48] : memref<2x1x64xf32, #tpu.memory_space<vmem>>, vector<1x1x64xf32>
    %158 = vector.shape_cast %157 : vector<1x1x64xf32> to vector<1x64xf32>
    %159 = vector.broadcast %158 : vector<1x64xf32> to vector<16x64xf32>
    %160 = arith.addf %156, %159 : vector<16x64xf32>
    %cst_49 = arith.constant 0.000000e+00 : f32
    %161 = vector.broadcast %cst_49 : f32 to vector<16x64xf32>
    %162 = arith.maximumf %160, %161 : vector<16x64xf32>
    %163 = arith.truncf %162 : vector<16x64xf32> to vector<16x64xbf16>
    %c0_50 = arith.constant 0 : index
    %c0_51 = arith.constant 0 : index
    %c0_52 = arith.constant 0 : index
    %164 = vector.load %arg11[%c0_50, %c0_51, %c0_52] : memref<2x64x32xbf16, #tpu.memory_space<vmem>>, vector<1x64x32xbf16>
    %165 = vector.shape_cast %164 : vector<1x64x32xbf16> to vector<64x32xbf16>
    %cst_53 = arith.constant dense<0.000000e+00> : vector<16x32xf32>
    %166 = tpu.matmul %163, %165, %cst_53 {dimension_numbers = #tpu.dot_dimension_numbers<[1], [0], [0], [1], [0, 0, 1, 1], [], []>} : vector<16x64xbf16>, vector<64x32xbf16>, vector<16x32xf32> -> vector<16x32xf32>
    %c0_54 = arith.constant 0 : index
    %c0_55 = arith.constant 0 : index
    %c0_56 = arith.constant 0 : index
    %167 = vector.load %arg12[%c0_54, %c0_55, %c0_56] : memref<2x1x32xf32, #tpu.memory_space<vmem>>, vector<1x1x32xf32>
    %168 = vector.shape_cast %167 : vector<1x1x32xf32> to vector<1x32xf32>
    %169 = vector.broadcast %168 : vector<1x32xf32> to vector<16x32xf32>
    %170 = arith.addf %166, %169 : vector<16x32xf32>
    %171 = arith.addf %128, %170 : vector<16x32xf32>
    %c1 = arith.constant 1 : index
    %c0_57 = arith.constant 0 : index
    %c0_58 = arith.constant 0 : index
    %172 = vector.load %arg4[%c1, %c0_57, %c0_58] : memref<2x4x32xf32, #tpu.memory_space<vmem>>, vector<1x4x32xf32>
    %173 = vector.shape_cast %172 : vector<1x4x32xf32> to vector<4x32xf32>
    %c1_59 = arith.constant 1 : index
    %c0_60 = arith.constant 0 : index
    %c0_61 = arith.constant 0 : index
    %174 = vector.load %arg5[%c1_59, %c0_60, %c0_61] : memref<2x32x96xbf16, #tpu.memory_space<vmem>>, vector<1x32x96xbf16>
    %175 = vector.shape_cast %174 : vector<1x32x96xbf16> to vector<32x96xbf16>
    %176 = vector.extract_strided_slice %173 {offsets = [0, 0], sizes = [1, 32], strides = [1, 1]} : vector<4x32xf32> to vector<1x32xf32>
    %177 = vector.extract_strided_slice %173 {offsets = [1, 0], sizes = [1, 32], strides = [1, 1]} : vector<4x32xf32> to vector<1x32xf32>
    %cst_62 = arith.constant dense<0.000000e+00> : vector<16xf32>
    %178 = vector.multi_reduction <add>, %171, %cst_62 [1] : vector<16x32xf32> to vector<16xf32>
    %179 = vector.shape_cast %178 : vector<16xf32> to vector<16x1xf32>
    %cst_63 = arith.constant 3.200000e+01 : f32
    %180 = vector.broadcast %cst_63 : f32 to vector<16x1xf32>
    %181 = arith.divf %179, %180 : vector<16x1xf32>
    %182 = vector.broadcast %181 : vector<16x1xf32> to vector<16x32xf32>
    %183 = arith.subf %171, %182 : vector<16x32xf32>
    %184 = arith.mulf %183, %183 : vector<16x32xf32>
    %cst_64 = arith.constant dense<0.000000e+00> : vector<16xf32>
    %185 = vector.multi_reduction <add>, %184, %cst_64 [1] : vector<16x32xf32> to vector<16xf32>
    %186 = vector.shape_cast %185 : vector<16xf32> to vector<16x1xf32>
    %cst_65 = arith.constant 3.200000e+01 : f32
    %187 = vector.broadcast %cst_65 : f32 to vector<16x1xf32>
    %188 = arith.divf %186, %187 : vector<16x1xf32>
    %189 = vector.broadcast %181 : vector<16x1xf32> to vector<16x32xf32>
    %190 = arith.subf %171, %189 : vector<16x32xf32>
    %cst_66 = arith.constant 9.99999974E-6 : f32
    %191 = vector.broadcast %cst_66 : f32 to vector<16x1xf32>
    %192 = arith.addf %188, %191 : vector<16x1xf32>
    %193 = math.rsqrt %192 : vector<16x1xf32>
    %194 = vector.broadcast %193 : vector<16x1xf32> to vector<16x32xf32>
    %195 = arith.mulf %190, %194 : vector<16x32xf32>
    %196 = vector.broadcast %176 : vector<1x32xf32> to vector<16x32xf32>
    %197 = arith.mulf %195, %196 : vector<16x32xf32>
    %198 = vector.broadcast %177 : vector<1x32xf32> to vector<16x32xf32>
    %199 = arith.addf %197, %198 : vector<16x32xf32>
    %200 = arith.truncf %199 : vector<16x32xf32> to vector<16x32xbf16>
    %cst_67 = arith.constant dense<0.000000e+00> : vector<16x96xf32>
    %201 = tpu.matmul %200, %175, %cst_67 {dimension_numbers = #tpu.dot_dimension_numbers<[1], [0], [0], [1], [0, 0, 1, 1], [], []>} : vector<16x32xbf16>, vector<32x96xbf16>, vector<16x96xf32> -> vector<16x96xf32>
    %c1_68 = arith.constant 1 : index
    %c0_69 = arith.constant 0 : index
    %c0_70 = arith.constant 0 : index
    %202 = vector.load %arg6[%c1_68, %c0_69, %c0_70] : memref<2x1x96xf32, #tpu.memory_space<vmem>>, vector<1x1x96xf32>
    %203 = vector.shape_cast %202 : vector<1x1x96xf32> to vector<1x96xf32>
    %204 = vector.broadcast %203 : vector<1x96xf32> to vector<16x96xf32>
    %205 = arith.addf %201, %204 : vector<16x96xf32>
    %206 = vector.extract_strided_slice %205 {offsets = [0, 0], sizes = [16, 8], strides = [1, 1]} : vector<16x96xf32> to vector<16x8xf32>
    %207 = vector.extract_strided_slice %205 {offsets = [0, 8], sizes = [16, 8], strides = [1, 1]} : vector<16x96xf32> to vector<16x8xf32>
    %208 = vector.extract_strided_slice %205 {offsets = [0, 16], sizes = [16, 8], strides = [1, 1]} : vector<16x96xf32> to vector<16x8xf32>
    %209 = vector.extract_strided_slice %205 {offsets = [0, 24], sizes = [16, 8], strides = [1, 1]} : vector<16x96xf32> to vector<16x8xf32>
    %210 = vector.shape_cast %206 : vector<16x8xf32> to vector<1x16x8xf32>
    %211 = vector.shape_cast %207 : vector<16x8xf32> to vector<1x16x8xf32>
    %212 = vector.shape_cast %208 : vector<16x8xf32> to vector<1x16x8xf32>
    %213 = vector.shape_cast %209 : vector<16x8xf32> to vector<1x16x8xf32>
    %214 = tpu.concatenate %210, %211, %212, %213 in 0 : vector<1x16x8xf32>, vector<1x16x8xf32>, vector<1x16x8xf32>, vector<1x16x8xf32> -> vector<4x16x8xf32>
    %215 = vector.extract_strided_slice %205 {offsets = [0, 32], sizes = [16, 8], strides = [1, 1]} : vector<16x96xf32> to vector<16x8xf32>
    %216 = vector.extract_strided_slice %205 {offsets = [0, 40], sizes = [16, 8], strides = [1, 1]} : vector<16x96xf32> to vector<16x8xf32>
    %217 = vector.extract_strided_slice %205 {offsets = [0, 48], sizes = [16, 8], strides = [1, 1]} : vector<16x96xf32> to vector<16x8xf32>
    %218 = vector.extract_strided_slice %205 {offsets = [0, 56], sizes = [16, 8], strides = [1, 1]} : vector<16x96xf32> to vector<16x8xf32>
    %219 = vector.shape_cast %215 : vector<16x8xf32> to vector<1x16x8xf32>
    %220 = vector.shape_cast %216 : vector<16x8xf32> to vector<1x16x8xf32>
    %221 = vector.shape_cast %217 : vector<16x8xf32> to vector<1x16x8xf32>
    %222 = vector.shape_cast %218 : vector<16x8xf32> to vector<1x16x8xf32>
    %223 = tpu.concatenate %219, %220, %221, %222 in 0 : vector<1x16x8xf32>, vector<1x16x8xf32>, vector<1x16x8xf32>, vector<1x16x8xf32> -> vector<4x16x8xf32>
    %224 = vector.extract_strided_slice %205 {offsets = [0, 64], sizes = [16, 8], strides = [1, 1]} : vector<16x96xf32> to vector<16x8xf32>
    %225 = vector.extract_strided_slice %205 {offsets = [0, 72], sizes = [16, 8], strides = [1, 1]} : vector<16x96xf32> to vector<16x8xf32>
    %226 = vector.extract_strided_slice %205 {offsets = [0, 80], sizes = [16, 8], strides = [1, 1]} : vector<16x96xf32> to vector<16x8xf32>
    %227 = vector.extract_strided_slice %205 {offsets = [0, 88], sizes = [16, 8], strides = [1, 1]} : vector<16x96xf32> to vector<16x8xf32>
    %228 = vector.shape_cast %224 : vector<16x8xf32> to vector<1x16x8xf32>
    %229 = vector.shape_cast %225 : vector<16x8xf32> to vector<1x16x8xf32>
    %230 = vector.shape_cast %226 : vector<16x8xf32> to vector<1x16x8xf32>
    %231 = vector.shape_cast %227 : vector<16x8xf32> to vector<1x16x8xf32>
    %232 = tpu.concatenate %228, %229, %230, %231 in 0 : vector<1x16x8xf32>, vector<1x16x8xf32>, vector<1x16x8xf32>, vector<1x16x8xf32> -> vector<4x16x8xf32>
    %233 = arith.truncf %214 : vector<4x16x8xf32> to vector<4x16x8xbf16>
    %234 = arith.truncf %223 : vector<4x16x8xf32> to vector<4x16x8xbf16>
    "tpu.trace_start"() <{level = 10 : i32, message = "hnd,hmd->hnm"}> : () -> ()
    %cst_71 = arith.constant dense<0.000000e+00> : vector<4x16x16xf32>
    %235 = tpu.matmul %233, %234, %cst_71 {dimension_numbers = #tpu.dot_dimension_numbers<[2], [2], [1], [1], [0, 0, 0, 1, 1, 1], [0], [0]>} : vector<4x16x8xbf16>, vector<4x16x8xbf16>, vector<4x16x16xf32> -> vector<4x16x16xf32>
    "tpu.trace_stop"() : () -> ()
    %236 = arith.addf %235, %6 : vector<4x16x16xf32>
    %cst_72 = arith.constant dense<0xFF800000> : vector<4x16xf32>
    %237 = vector.multi_reduction <maximumf>, %236, %cst_72 [2] : vector<4x16x16xf32> to vector<4x16xf32>
    %238 = vector.shape_cast %237 : vector<4x16xf32> to vector<4x16x1xf32>
    %239 = vector.broadcast %238 : vector<4x16x1xf32> to vector<4x16x16xf32>
    %240 = arith.subf %236, %239 : vector<4x16x16xf32>
    %241 = math.exp %240 : vector<4x16x16xf32>
    %cst_73 = arith.constant dense<0.000000e+00> : vector<4x16xf32>
    %242 = vector.multi_reduction <add>, %241, %cst_73 [2] : vector<4x16x16xf32> to vector<4x16xf32>
    %243 = vector.shape_cast %242 : vector<4x16xf32> to vector<4x16x1xf32>
    %244 = tpu.reciprocal %243 {approx = true} : vector<4x16x1xf32> -> vector<4x16x1xf32>
    %245 = vector.broadcast %244 : vector<4x16x1xf32> to vector<4x16x16xf32>
    %246 = arith.mulf %241, %245 : vector<4x16x16xf32>
    %247 = arith.truncf %246 : vector<4x16x16xf32> to vector<4x16x16xbf16>
    %248 = arith.truncf %232 : vector<4x16x8xf32> to vector<4x16x8xbf16>
    "tpu.trace_start"() <{level = 10 : i32, message = "hnm,hmd->hnd"}> : () -> ()
    %cst_74 = arith.constant dense<0.000000e+00> : vector<4x16x8xf32>
    %249 = tpu.matmul %247, %248, %cst_74 {dimension_numbers = #tpu.dot_dimension_numbers<[2], [1], [1], [2], [0, 0, 0, 1, 1, 2], [0], [0]>} : vector<4x16x16xbf16>, vector<4x16x8xbf16>, vector<4x16x8xf32> -> vector<4x16x8xf32>
    "tpu.trace_stop"() : () -> ()
    %250 = vector.extract_strided_slice %249 {offsets = [0, 0, 0], sizes = [1, 16, 8], strides = [1, 1, 1]} : vector<4x16x8xf32> to vector<1x16x8xf32>
    %251 = vector.shape_cast %250 : vector<1x16x8xf32> to vector<16x8xf32>
    %252 = vector.extract_strided_slice %249 {offsets = [1, 0, 0], sizes = [1, 16, 8], strides = [1, 1, 1]} : vector<4x16x8xf32> to vector<1x16x8xf32>
    %253 = vector.shape_cast %252 : vector<1x16x8xf32> to vector<16x8xf32>
    %254 = vector.extract_strided_slice %249 {offsets = [2, 0, 0], sizes = [1, 16, 8], strides = [1, 1, 1]} : vector<4x16x8xf32> to vector<1x16x8xf32>
    %255 = vector.shape_cast %254 : vector<1x16x8xf32> to vector<16x8xf32>
    %256 = vector.extract_strided_slice %249 {offsets = [3, 0, 0], sizes = [1, 16, 8], strides = [1, 1, 1]} : vector<4x16x8xf32> to vector<1x16x8xf32>
    %257 = vector.shape_cast %256 : vector<1x16x8xf32> to vector<16x8xf32>
    %258 = tpu.concatenate %251, %253, %255, %257 in 1 : vector<16x8xf32>, vector<16x8xf32>, vector<16x8xf32>, vector<16x8xf32> -> vector<16x32xf32>
    %259 = arith.truncf %258 : vector<16x32xf32> to vector<16x32xbf16>
    %c1_75 = arith.constant 1 : index
    %c0_76 = arith.constant 0 : index
    %c0_77 = arith.constant 0 : index
    %260 = vector.load %arg7[%c1_75, %c0_76, %c0_77] : memref<2x32x32xbf16, #tpu.memory_space<vmem>>, vector<1x32x32xbf16>
    %261 = vector.shape_cast %260 : vector<1x32x32xbf16> to vector<32x32xbf16>
    %cst_78 = arith.constant dense<0.000000e+00> : vector<16x32xf32>
    %262 = tpu.matmul %259, %261, %cst_78 {dimension_numbers = #tpu.dot_dimension_numbers<[1], [0], [0], [1], [0, 0, 1, 1], [], []>} : vector<16x32xbf16>, vector<32x32xbf16>, vector<16x32xf32> -> vector<16x32xf32>
    %c1_79 = arith.constant 1 : index
    %c0_80 = arith.constant 0 : index
    %c0_81 = arith.constant 0 : index
    %263 = vector.load %arg8[%c1_79, %c0_80, %c0_81] : memref<2x1x32xf32, #tpu.memory_space<vmem>>, vector<1x1x32xf32>
    %264 = vector.shape_cast %263 : vector<1x1x32xf32> to vector<1x32xf32>
    %265 = vector.broadcast %264 : vector<1x32xf32> to vector<16x32xf32>
    %266 = arith.addf %262, %265 : vector<16x32xf32>
    %267 = arith.addf %171, %266 : vector<16x32xf32>
    %268 = vector.extract_strided_slice %173 {offsets = [2, 0], sizes = [1, 32], strides = [1, 1]} : vector<4x32xf32> to vector<1x32xf32>
    %269 = vector.extract_strided_slice %173 {offsets = [3, 0], sizes = [1, 32], strides = [1, 1]} : vector<4x32xf32> to vector<1x32xf32>
    %cst_82 = arith.constant dense<0.000000e+00> : vector<16xf32>
    %270 = vector.multi_reduction <add>, %267, %cst_82 [1] : vector<16x32xf32> to vector<16xf32>
    %271 = vector.shape_cast %270 : vector<16xf32> to vector<16x1xf32>
    %cst_83 = arith.constant 3.200000e+01 : f32
    %272 = vector.broadcast %cst_83 : f32 to vector<16x1xf32>
    %273 = arith.divf %271, %272 : vector<16x1xf32>
    %274 = vector.broadcast %273 : vector<16x1xf32> to vector<16x32xf32>
    %275 = arith.subf %267, %274 : vector<16x32xf32>
    %276 = arith.mulf %275, %275 : vector<16x32xf32>
    %cst_84 = arith.constant dense<0.000000e+00> : vector<16xf32>
    %277 = vector.multi_reduction <add>, %276, %cst_84 [1] : vector<16x32xf32> to vector<16xf32>
    %278 = vector.shape_cast %277 : vector<16xf32> to vector<16x1xf32>
    %cst_85 = arith.constant 3.200000e+01 : f32
    %279 = vector.broadcast %cst_85 : f32 to vector<16x1xf32>
    %280 = arith.divf %278, %279 : vector<16x1xf32>
    %281 = vector.broadcast %273 : vector<16x1xf32> to vector<16x32xf32>
    %282 = arith.subf %267, %281 : vector<16x32xf32>
    %cst_86 = arith.constant 9.99999974E-6 : f32
    %283 = vector.broadcast %cst_86 : f32 to vector<16x1xf32>
    %284 = arith.addf %280, %283 : vector<16x1xf32>
    %285 = math.rsqrt %284 : vector<16x1xf32>
    %286 = vector.broadcast %285 : vector<16x1xf32> to vector<16x32xf32>
    %287 = arith.mulf %282, %286 : vector<16x32xf32>
    %288 = vector.broadcast %268 : vector<1x32xf32> to vector<16x32xf32>
    %289 = arith.mulf %287, %288 : vector<16x32xf32>
    %290 = vector.broadcast %269 : vector<1x32xf32> to vector<16x32xf32>
    %291 = arith.addf %289, %290 : vector<16x32xf32>
    %292 = arith.truncf %291 : vector<16x32xf32> to vector<16x32xbf16>
    %c1_87 = arith.constant 1 : index
    %c0_88 = arith.constant 0 : index
    %c0_89 = arith.constant 0 : index
    %293 = vector.load %arg9[%c1_87, %c0_88, %c0_89] : memref<2x32x64xbf16, #tpu.memory_space<vmem>>, vector<1x32x64xbf16>
    %294 = vector.shape_cast %293 : vector<1x32x64xbf16> to vector<32x64xbf16>
    %cst_90 = arith.constant dense<0.000000e+00> : vector<16x64xf32>
    %295 = tpu.matmul %292, %294, %cst_90 {dimension_numbers = #tpu.dot_dimension_numbers<[1], [0], [0], [1], [0, 0, 1, 1], [], []>} : vector<16x32xbf16>, vector<32x64xbf16>, vector<16x64xf32> -> vector<16x64xf32>
    %c1_91 = arith.constant 1 : index
    %c0_92 = arith.constant 0 : index
    %c0_93 = arith.constant 0 : index
    %296 = vector.load %arg10[%c1_91, %c0_92, %c0_93] : memref<2x1x64xf32, #tpu.memory_space<vmem>>, vector<1x1x64xf32>
    %297 = vector.shape_cast %296 : vector<1x1x64xf32> to vector<1x64xf32>
    %298 = vector.broadcast %297 : vector<1x64xf32> to vector<16x64xf32>
    %299 = arith.addf %295, %298 : vector<16x64xf32>
    %cst_94 = arith.constant 0.000000e+00 : f32
    %300 = vector.broadcast %cst_94 : f32 to vector<16x64xf32>
    %301 = arith.maximumf %299, %300 : vector<16x64xf32>
    %302 = arith.truncf %301 : vector<16x64xf32> to vector<16x64xbf16>
    %c1_95 = arith.constant 1 : index
    %c0_96 = arith.constant 0 : index
    %c0_97 = arith.constant 0 : index
    %303 = vector.load %arg11[%c1_95, %c0_96, %c0_97] : memref<2x64x32xbf16, #tpu.memory_space<vmem>>, vector<1x64x32xbf16>
    %304 = vector.shape_cast %303 : vector<1x64x32xbf16> to vector<64x32xbf16>
    %cst_98 = arith.constant dense<0.000000e+00> : vector<16x32xf32>
    %305 = tpu.matmul %302, %304, %cst_98 {dimension_numbers = #tpu.dot_dimension_numbers<[1], [0], [0], [1], [0, 0, 1, 1], [], []>} : vector<16x64xbf16>, vector<64x32xbf16>, vector<16x32xf32> -> vector<16x32xf32>
    %c1_99 = arith.constant 1 : index
    %c0_100 = arith.constant 0 : index
    %c0_101 = arith.constant 0 : index
    %306 = vector.load %arg12[%c1_99, %c0_100, %c0_101] : memref<2x1x32xf32, #tpu.memory_space<vmem>>, vector<1x1x32xf32>
    %307 = vector.shape_cast %306 : vector<1x1x32xf32> to vector<1x32xf32>
    %308 = vector.broadcast %307 : vector<1x32xf32> to vector<16x32xf32>
    %309 = arith.addf %305, %308 : vector<16x32xf32>
    %310 = arith.addf %267, %309 : vector<16x32xf32>
    %311 = vector.extract_strided_slice %2 {offsets = [2, 0], sizes = [1, 32], strides = [1, 1]} : vector<4x32xf32> to vector<1x32xf32>
    %312 = vector.extract_strided_slice %2 {offsets = [3, 0], sizes = [1, 32], strides = [1, 1]} : vector<4x32xf32> to vector<1x32xf32>
    %cst_102 = arith.constant dense<0.000000e+00> : vector<16xf32>
    %313 = vector.multi_reduction <add>, %310, %cst_102 [1] : vector<16x32xf32> to vector<16xf32>
    %314 = vector.shape_cast %313 : vector<16xf32> to vector<16x1xf32>
    %cst_103 = arith.constant 3.200000e+01 : f32
    %315 = vector.broadcast %cst_103 : f32 to vector<16x1xf32>
    %316 = arith.divf %314, %315 : vector<16x1xf32>
    %317 = vector.broadcast %316 : vector<16x1xf32> to vector<16x32xf32>
    %318 = arith.subf %310, %317 : vector<16x32xf32>
    %319 = arith.mulf %318, %318 : vector<16x32xf32>
    %cst_104 = arith.constant dense<0.000000e+00> : vector<16xf32>
    %320 = vector.multi_reduction <add>, %319, %cst_104 [1] : vector<16x32xf32> to vector<16xf32>
    %321 = vector.shape_cast %320 : vector<16xf32> to vector<16x1xf32>
    %cst_105 = arith.constant 3.200000e+01 : f32
    %322 = vector.broadcast %cst_105 : f32 to vector<16x1xf32>
    %323 = arith.divf %321, %322 : vector<16x1xf32>
    %324 = vector.broadcast %316 : vector<16x1xf32> to vector<16x32xf32>
    %325 = arith.subf %310, %324 : vector<16x32xf32>
    %cst_106 = arith.constant 9.99999974E-6 : f32
    %326 = vector.broadcast %cst_106 : f32 to vector<16x1xf32>
    %327 = arith.addf %323, %326 : vector<16x1xf32>
    %328 = math.rsqrt %327 : vector<16x1xf32>
    %329 = vector.broadcast %328 : vector<16x1xf32> to vector<16x32xf32>
    %330 = arith.mulf %325, %329 : vector<16x32xf32>
    %331 = vector.broadcast %311 : vector<1x32xf32> to vector<16x32xf32>
    %332 = arith.mulf %330, %331 : vector<16x32xf32>
    %333 = vector.broadcast %312 : vector<1x32xf32> to vector<16x32xf32>
    %334 = arith.addf %332, %333 : vector<16x32xf32>
    %c0_107 = arith.constant 0 : index
    %c0_108 = arith.constant 0 : index
    %335 = vector.load %arg13[%c0_107, %c0_108] : memref<16x32xf32, #tpu.memory_space<vmem>>, vector<16x32xf32>
    tpu.vector_store %arg13[%c0_107, %c0_108], %334 {strides = array<i32>} : memref<16x32xf32, #tpu.memory_space<vmem>>, vector<16x32xf32>,
    return
  }
}

</mosaic_0001>

<llo_original>
// kernel: mul.14
$region0: #{mul.14}
  %s0 = inlined_call_operand.vmem [shape: f32[2,8], index: 0, kind: input, shape index: {}]
  %s1 = inlined_call_operand.vmem [shape: f32[16], index: 1, kind: output, shape index: {}]
  $region1: #{mul.14} parent=0
    #allocation0 [shape = 'u8[4096]{0}', space=vmem, size = 0x1000, scoped, tag = 'scoped mem for output reshape']
    #allocation1 [shape = 'u8[4096]{0}', space=vmem, size = 0x1000, scoped, tag = 'scoped mem for input reshape']
    %s3 = sshll.u32 1, 2
    %s4 = ssub.s32 %s3, 1
    %v5 = vld [vmem:[%s0] sm:%s4]
    %6 = vst [vmem:[#allocation1] sm:%s4] %v5
    %v7 = vld [vmem:[#allocation1] sm:$0x1]
    %vm8 = vcmask 64512
    %9 = vst.msk [vmem:[#allocation0] sm:$0x1] %vm8, %v7
    %s10 = scalar_lea.vmem [#allocation1], 1
    %v11 = vld [vmem:[%s10] sm:$0x1]
    %12 = vrot.lane.b32.xlu0 %v11, 8
    %v13 = vpop.permute.xlu0 %12
    %vm14 = vcmask 130112
    %15 = vst.msk [vmem:[#allocation0] sm:$0x1] %vm14, %v13
    %s17 = sshll.u32 1, 1
    %s18 = ssub.s32 %s17, 1
    %v20 = vld [vmem:[#allocation0] sm:%s18]
    %s21 = sshll.u32 1, 1
    %s22 = ssub.s32 %s21, 1
    %23 = vst [vmem:[%s1] sm:%s22] %v20

// kernel: transformer_encoder_forward.1
$region0: #{transformer_encoder_forward.1}
  #allocation0 [shape = 'u32[]', space=smem, size = 0x4, offset = 0x4, fixed_abs, tag = 'smem constant byte address 0x4 - core index']
  #allocation1 [shape = 'u32[144,128]{1,0:T(1,128)}', space=vmem, size = 0x12000, scoped, tag = 'internal scratch']
  %s0 = inlined_call_operand.vmem [shape: f32[16,32], index: 0, kind: input, shape index: {}]
  %s1 = inlined_call_operand.vmem [shape: f32[16,1], index: 1, kind: input, shape index: {}]
  %s2 = inlined_call_operand.vmem [shape: f32[16,16], index: 2, kind: input, shape index: {}]
  %s3 = inlined_call_operand.vmem [shape: f32[4,32], index: 3, kind: input, shape index: {}]
  %s4 = inlined_call_operand.vmem [shape: f32[2,4,32], index: 4, kind: input, shape index: {}]
  %s5 = inlined_call_operand.vmem [shape: bf16[2,32,96], index: 5, kind: input, shape index: {}]
  %s6 = inlined_call_operand.vmem [shape: f32[2,1,96], index: 6, kind: input, shape index: {}]
  %s7 = inlined_call_operand.vmem [shape: bf16[2,32,32], index: 7, kind: input, shape index: {}]
  %s8 = inlined_call_operand.vmem [shape: f32[2,1,32], index: 8, kind: input, shape index: {}]
  %s9 = inlined_call_operand.vmem [shape: bf16[2,32,64], index: 9, kind: input, shape index: {}]
  %s10 = inlined_call_operand.vmem [shape: f32[2,1,64], index: 10, kind: input, shape index: {}]
  %s11 = inlined_call_operand.vmem [shape: bf16[2,64,32], index: 11, kind: input, shape index: {}]
  %s12 = inlined_call_operand.vmem [shape: f32[2,1,32], index: 12, kind: input, shape index: {}]
  %s13 = inlined_call_operand.vmem [shape: f32[16,32], index: 13, kind: output, shape index: {}]
  %s14 = sld [smem:[#allocation0]]
  $region62: #{transformer_encoder_forward.1} parent=0
    _
  %s16 = ssub.s32 1, %s14
  %s17 = scalar_select 0, %s16, %s14
  // Predicated region
  $region2: #{transformer_encoder_forward.1} parent=0 // pred_check
    _
  $region3: #{transformer_encoder_forward.1} parent=0 // pred_check_branch
    %19 = sbr.rel (0) target = $region5
  $region4: #{transformer_encoder_forward.1} parent=0 // pred_region
    _
  $region5: #{transformer_encoder_forward.1} parent=0 // pred_fallthru
    _
  // Predicated region
  $region6: #{transformer_encoder_forward.1} parent=0 // pred_check
    _
  $region7: #{transformer_encoder_forward.1} parent=0 // pred_check_branch
    %21 = sbr.rel (0) target = $region9
  $region8: #{transformer_encoder_forward.1} parent=0 // pred_region
    _
  $region9: #{transformer_encoder_forward.1} parent=0 // pred_fallthru
    _
  // Predicated region
  $region10: #{transformer_encoder_forward.1} parent=0 // pred_check
    _
  $region11: #{transformer_encoder_forward.1} parent=0 // pred_check_branch
    %23 = sbr.rel (0) target = $region13
  $region12: #{transformer_encoder_forward.1} parent=0 // pred_region
    _
  $region13: #{transformer_encoder_forward.1} parent=0 // pred_fallthru
    _
  // Predicated region
  $region14: #{transformer_encoder_forward.1} parent=0 // pred_check
    _
  $region15: #{transformer_encoder_forward.1} parent=0 // pred_check_branch
    %25 = sbr.rel (0) target = $region17
  $region16: #{transformer_encoder_forward.1} parent=0 // pred_region
    _
  $region17: #{transformer_encoder_forward.1} parent=0 // pred_fallthru
    _
  // Predicated region
  $region18: #{transformer_encoder_forward.1} parent=0 // pred_check
    _
  $region19: #{transformer_encoder_forward.1} parent=0 // pred_check_branch
    %27 = sbr.rel (0) target = $region21
  $region20: #{transformer_encoder_forward.1} parent=0 // pred_region
    _
  $region21: #{transformer_encoder_forward.1} parent=0 // pred_fallthru
    _
  // Predicated region
  $region22: #{transformer_encoder_forward.1} parent=0 // pred_check
    _
  $region23: #{transformer_encoder_forward.1} parent=0 // pred_check_branch
    %29 = sbr.rel (0) target = $region25
  $region24: #{transformer_encoder_forward.1} parent=0 // pred_region
    _
  $region25: #{transformer_encoder_forward.1} parent=0 // pred_fallthru
    _
  // Predicated region
  $region26: #{transformer_encoder_forward.1} parent=0 // pred_check
    _
  $region27: #{transformer_encoder_forward.1} parent=0 // pred_check_branch
    %31 = sbr.rel (0) target = $region29
  $region28: #{transformer_encoder_forward.1} parent=0 // pred_region
    _
  $region29: #{transformer_encoder_forward.1} parent=0 // pred_fallthru
    _
  // Predicated region
  $region30: #{transformer_encoder_forward.1} parent=0 // pred_check
    _
  $region31: #{transformer_encoder_forward.1} parent=0 // pred_check_branch
    %33 = sbr.rel (0) target = $region33
  $region32: #{transformer_encoder_forward.1} parent=0 // pred_region
    _
  $region33: #{transformer_encoder_forward.1} parent=0 // pred_fallthru
    _
  // Predicated region
  $region34: #{transformer_encoder_forward.1} parent=0 // pred_check
    _
  $region35: #{transformer_encoder_forward.1} parent=0 // pred_check_branch
    %35 = sbr.rel (0) target = $region37
  $region36: #{transformer_encoder_forward.1} parent=0 // pred_region
    _
  $region37: #{transformer_encoder_forward.1} parent=0 // pred_fallthru
    _
  // Predicated region
  $region38: #{transformer_encoder_forward.1} parent=0 // pred_check
    _
  $region39: #{transformer_encoder_forward.1} parent=0 // pred_check_branch
    %37 = sbr.rel (0) target = $region41
  $region40: #{transformer_encoder_forward.1} parent=0 // pred_region
    _
  $region41: #{transformer_encoder_forward.1} parent=0 // pred_fallthru
    _
  // Predicated region
  $region42: #{transformer_encoder_forward.1} parent=0 // pred_check
    _
  $region43: #{transformer_encoder_forward.1} parent=0 // pred_check_branch
    %39 = sbr.rel (0) target = $region45
  $region44: #{transformer_encoder_forward.1} parent=0 // pred_region
    _
  $region45: #{transformer_encoder_forward.1} parent=0 // pred_fallthru
    _
  // Predicated region
  $region46: #{transformer_encoder_forward.1} parent=0 // pred_check
    _
  $region47: #{transformer_encoder_forward.1} parent=0 // pred_check_branch
    %41 = sbr.rel (0) target = $region49
  $region48: #{transformer_encoder_forward.1} parent=0 // pred_region
    _
  $region49: #{transformer_encoder_forward.1} parent=0 // pred_fallthru
    _
  // Predicated region
  $region50: #{transformer_encoder_forward.1} parent=0 // pred_check
    _
  $region51: #{transformer_encoder_forward.1} parent=0 // pred_check_branch
    %43 = sbr.rel (0) target = $region53
  $region52: #{transformer_encoder_forward.1} parent=0 // pred_region
    _
  $region53: #{transformer_encoder_forward.1} parent=0 // pred_fallthru
    _
  %v45 = vld [vmem:[%s0] sm:$0xff]
  %v46 = vld [vmem:[%s0 + $0x8] sm:$0xff]
  %v47 = vld [vmem:[%s1] sm:$0xff]
  %v48 = vld [vmem:[%s1 + $0x8] sm:$0xff]
  %v49 = vld [vmem:[%s3] sm:$0xf]
  %v50 = vld [vmem:[%s2] sm:$0xff]
  %v51 = vld [vmem:[%s2 + $0x8] sm:$0xff]
  %vm52 = vcmask 261120
  %v53 = vsel %vm52, %v45, 0.0
  %54 = vadd.xlane.f32.xlu0 %v53
  %v55 = vpop.xlane.xlu0 %54
  %v56 = vsel %vm52, %v46, 0.0
  %57 = vadd.xlane.f32.xlu0 %v56
  %v58 = vpop.xlane.xlu0 %57
  %v59 = vrcp.pop 32.0
  %v60 = vmul.f32 %v55, %v59
  %v61 = vmul.f32 %v58, %v59
  %v62 = vsub.f32 %v45, %v60
  %v63 = vsub.f32 %v46, %v61
  %v64 = vmul.f32 %v62, %v62
  %v65 = vmul.f32 %v63, %v63
  %v66 = vsel %vm52, %v64, 0.0
  %67 = vadd.xlane.f32.xlu0 %v66
  %v68 = vpop.xlane.xlu0 %67
  %v69 = vsel %vm52, %v65, 0.0
  %70 = vadd.xlane.f32.xlu0 %v69
  %v71 = vpop.xlane.xlu0 %70
  %v72 = vmul.f32 %v68, %v59
  %v73 = vmul.f32 %v71, %v59
  %v74 = vadd.f32 %v72, 1e-05
  %v75 = vadd.f32 %v73, 1e-05
  %v76 = vrsqrt.pop %v74
  %v77 = vrsqrt.pop %v75
  %v78 = vmul.f32 %v62, %v76
  %v79 = vmul.f32 %v63, %v77
  %v80 = vlaneseq
  %v81 = vshrl.u32 %v80, 7
  %v82 = vsub.s32 0, %v81
  %v83 = vrot.slane %v49, %v82
  %v84 = vmul.f32 %v78, %v83
  %v85 = vmul.f32 %v79, %v83
  %v86 = vlaneseq
  %v87 = vshrl.u32 %v86, 7
  %v88 = vsub.s32 1, %v87
  %v89 = vrot.slane %v49, %v88
  %v90 = vadd.f32 %v84, %v89
  %v91 = vadd.f32 %v85, %v89
  %93 = vset.pattern.permute.xlu0 0
  %94 = vperm.xlu0 %93, %v47
  %v95 = vpop.permute.xlu0 %94
  %98 = vset.pattern.permute.xlu0 0
  %99 = vperm.xlu0 %98, %v48
  %v100 = vpop.permute.xlu0 %99
  %v102 = vmul.f32 %v90, %v95
  %v103 = vmul.f32 %v91, %v100
  %v104 = vld [vmem:[%s4] sm:$0xf]
  %v105 = vld [vmem:[%s5] sm:$0xf]
  %v106 = vld [vmem:[%s5 + $0x4] sm:$0xf]
  %v107 = vld [vmem:[%s5 + $0x8] sm:$0xf]
  %v108 = vld [vmem:[%s5 + $0xc] sm:$0xf]
  %v109 = vsel %vm52, %v102, 0.0
  %110 = vadd.xlane.f32.xlu0 %v109
  %v111 = vpop.xlane.xlu0 %110
  %v112 = vsel %vm52, %v103, 0.0
  %113 = vadd.xlane.f32.xlu0 %v112
  %v114 = vpop.xlane.xlu0 %113
  %v115 = vmul.f32 %v111, %v59
  %v116 = vmul.f32 %v114, %v59
  %v117 = vsub.f32 %v102, %v115
  %v118 = vsub.f32 %v103, %v116
  %v119 = vmul.f32 %v117, %v117
  %v120 = vmul.f32 %v118, %v118
  %v121 = vsel %vm52, %v119, 0.0
  %122 = vadd.xlane.f32.xlu0 %v121
  %v123 = vpop.xlane.xlu0 %122
  %v124 = vsel %vm52, %v120, 0.0
  %125 = vadd.xlane.f32.xlu0 %v124
  %v126 = vpop.xlane.xlu0 %125
  %v127 = vmul.f32 %v123, %v59
  %v128 = vmul.f32 %v126, %v59
  %v129 = vadd.f32 %v127, 1e-05
  %v130 = vadd.f32 %v128, 1e-05
  %v131 = vrsqrt.pop %v129
  %v132 = vrsqrt.pop %v130
  %v133 = vmul.f32 %v117, %v131
  %v134 = vmul.f32 %v118, %v132
  %v135 = vlaneseq
  %v136 = vshrl.u32 %v135, 7
  %v137 = vsub.s32 0, %v136
  %v138 = vrot.slane %v104, %v137
  %v139 = vmul.f32 %v133, %v138
  %v140 = vmul.f32 %v134, %v138
  %v141 = vlaneseq
  %v142 = vshrl.u32 %v141, 7
  %v143 = vsub.s32 1, %v142
  %v144 = vrot.slane %v104, %v143
  %v145 = vadd.f32 %v139, %v144
  %v146 = vadd.f32 %v140, %v144
  %v147 = vpack.c.bf16 %v146, %v145
  %v148 = vld [vmem:[%s6] sm:$0x1]
  %v150 = vlaneseq
  %v151 = vshrl.u32 %v150, 7
  %v152 = vsub.s32 0, %v151
  %v153 = vrot.slane %v148, %v152
  %v159 = vunpack.c.l.b16 %v105
  %v160 = vunpack.c.l.b16 %v106
  %v161 = vunpack.c.l.b16 %v107
  %v162 = vunpack.c.l.b16 %v108
  %v163 = vpack.c.b16 %v160, %v159
  %v164 = vpack.c.b16 %v162, %v161
  %v168 = vsel %vm52, %v147, 0
  %170 = vmatprep.subr.bf16.mxu0 0
  %171 = vmatpush1.bf16.msra.mxu0 0
  %172 = vmatprep.subr.bf16.mxu0 0
  %173 = vmatpush1.bf16.msra.mxu0 0
  %174 = vmatprep.subr.bf16.mxu0 0
  %175 = vmatpush1.bf16.msra.mxu0 0
  %176 = vmatprep.subr.bf16.mxu0 0
  %177 = vmatpush1.bf16.msra.mxu0 0
  %178 = vmatprep.subr.bf16.mxu0 0
  %179 = vmatpush1.bf16.msra.mxu0 0
  %180 = vmatprep.subr.bf16.mxu0 0
  %181 = vmatpush1.bf16.msra.mxu0 0
  %182 = vmatprep.subr.bf16.mxu0 0
  %183 = vmatpush1.bf16.msra.mxu0 %v164
  %184 = vmatprep.subr.bf16.mxu0 0
  %185 = vmatpush1.bf16.msra.mxu0 %v163
  %186 = vmatprep.subr.bf16.mxu0 0
  %187 = vmatpush2.bf16.msra.mxu0 0
  %188 = vmatprep.subr.bf16.mxu0 0
  %189 = vmatpush2.bf16.msra.mxu0 0
  %190 = vmatprep.subr.bf16.mxu0 0
  %191 = vmatpush2.bf16.msra.mxu0 0
  %192 = vmatprep.subr.bf16.mxu0 0
  %193 = vmatpush2.bf16.msra.mxu0 0
  %194 = vmatprep.subr.bf16.mxu0 0
  %195 = vmatpush2.bf16.msra.mxu0 0
  %196 = vmatprep.subr.bf16.mxu0 0
  %197 = vmatpush2.bf16.msra.mxu0 0
  %198 = vmatprep.subr.bf16.mxu0 0
  %199 = vmatpush2.bf16.msra.mxu0 0
  %200 = vmatprep.subr.bf16.mxu0 0
  %201 = vmatpush2.bf16.msra.mxu0 0
  %202 = vmatprep.mubr.bf16.mxu0 0
  %203 = vmatmul.mubr.bf16.gmra.mxu0 %v168
  %v204 = vpop.f32.mrf.mxu0
  %v205 = vadd.f32 %v153, %v204
  %v206 = vpop.f32.mrf.mxu0
  %v207 = vpop.f32.mrf.mxu0
  %v208 = vadd.f32 %v153, %v207
  %v209 = vpop.f32.mrf.mxu0
  %210 = vdwg.mxu0
  %213 = vrot.lane.b32.xlu0 %v205, 120
  %v214 = vpop.permute.xlu0 %213
  %215 = vrot.lane.b32.xlu0 %v208, 120
  %v216 = vpop.permute.xlu0 %215
  %219 = vrot.lane.b32.xlu0 %v205, 112
  %v220 = vpop.permute.xlu0 %219
  %221 = vrot.lane.b32.xlu0 %v208, 112
  %v222 = vpop.permute.xlu0 %221
  %225 = vrot.lane.b32.xlu0 %v205, 104
  %v226 = vpop.permute.xlu0 %225
  %227 = vrot.lane.b32.xlu0 %v208, 104
  %v228 = vpop.permute.xlu0 %227
  %v231 = vpack.c.bf16 %v208, %v205
  %v232 = vpack.c.bf16 %v216, %v214
  %v233 = vpack.c.bf16 %v222, %v220
  %v234 = vpack.c.bf16 %v228, %v226
  %236 = vrot.lane.b32.xlu0 %v231, 96
  %v237 = vpop.permute.xlu0 %236
  %vm238 = vcmask 64512
  %v240 = vsel %vm238, %v231, 0
  %v243 = vsel %vm238, %v237, 0
  %245 = vmatprep.subr.bf16.mxu0 0
  %246 = vmatpush1.bf16.xpose.msra.mxu0 0
  %247 = vmatprep.subr.bf16.mxu0 0
  %248 = vmatpush1.bf16.xpose.msra.mxu0 0
  %249 = vmatprep.subr.bf16.mxu0 0
  %250 = vmatpush1.bf16.xpose.msra.mxu0 0
  %251 = vmatprep.subr.bf16.mxu0 0
  %252 = vmatpush1.bf16.xpose.msra.mxu0 0
  %253 = vmatprep.subr.bf16.mxu0 0
  %254 = vmatpush1.bf16.xpose.msra.mxu0 0
  %255 = vmatprep.subr.bf16.mxu0 0
  %256 = vmatpush1.bf16.xpose.msra.mxu0 0
  %257 = vmatprep.subr.bf16.mxu0 0
  %258 = vmatpush1.bf16.xpose.msra.mxu0 0
  %259 = vmatprep.subr.bf16.mxu0 0
  %260 = vmatpush1.bf16.xpose.msra.mxu0 %v243
  %261 = vmatprep.subr.bf16.mxu0 0
  %262 = vmatpush2.bf16.xpose.msra.mxu0 0
  %263 = vmatprep.subr.bf16.mxu0 0
  %264 = vmatpush2.bf16.xpose.msra.mxu0 0
  %265 = vmatprep.subr.bf16.mxu0 0
  %266 = vmatpush2.bf16.xpose.msra.mxu0 0
  %267 = vmatprep.subr.bf16.mxu0 0
  %268 = vmatpush2.bf16.xpose.msra.mxu0 0
  %269 = vmatprep.subr.bf16.mxu0 0
  %270 = vmatpush2.bf16.xpose.msra.mxu0 0
  %271 = vmatprep.subr.bf16.mxu0 0
  %272 = vmatpush2.bf16.xpose.msra.mxu0 0
  %273 = vmatprep.subr.bf16.mxu0 0
  %274 = vmatpush2.bf16.xpose.msra.mxu0 0
  %275 = vmatprep.subr.bf16.mxu0 0
  %276 = vmatpush2.bf16.xpose.msra.mxu0 0
  %277 = vmatprep.mubr.bf16.mxu0 0
  %278 = vmatmul.mubr.bf16.gmra.mxu0 %v240
  %v279 = vpop.f32.mrf.mxu0
  %v280 = vadd.f32 %v50, %v279
  %v281 = vpop.f32.mrf.mxu0
  %v282 = vpop.f32.mrf.mxu0
  %v283 = vadd.f32 %v51, %v282
  %v284 = vpop.f32.mrf.mxu0
  %285 = vdwg.mxu0
  %287 = vrot.lane.b32.xlu0 %v232, 96
  %v288 = vpop.permute.xlu0 %287
  %v290 = vsel %vm238, %v232, 0
  %v293 = vsel %vm238, %v288, 0
  %295 = vmatprep.subr.bf16.mxu0 0
  %296 = vmatpush1.bf16.xpose.msra.mxu0 0
  %297 = vmatprep.subr.bf16.mxu0 0
  %298 = vmatpush1.bf16.xpose.msra.mxu0 0
  %299 = vmatprep.subr.bf16.mxu0 0
  %300 = vmatpush1.bf16.xpose.msra.mxu0 0
  %301 = vmatprep.subr.bf16.mxu0 0
  %302 = vmatpush1.bf16.xpose.msra.mxu0 0
  %303 = vmatprep.subr.bf16.mxu0 0
  %304 = vmatpush1.bf16.xpose.msra.mxu0 0
  %305 = vmatprep.subr.bf16.mxu0 0
  %306 = vmatpush1.bf16.xpose.msra.mxu0 0
  %307 = vmatprep.subr.bf16.mxu0 0
  %308 = vmatpush1.bf16.xpose.msra.mxu0 0
  %309 = vmatprep.subr.bf16.mxu0 0
  %310 = vmatpush1.bf16.xpose.msra.mxu0 %v293
  %311 = vmatprep.subr.bf16.mxu0 0
  %312 = vmatpush2.bf16.xpose.msra.mxu0 0
  %313 = vmatprep.subr.bf16.mxu0 0
  %314 = vmatpush2.bf16.xpose.msra.mxu0 0
  %315 = vmatprep.subr.bf16.mxu0 0
  %316 = vmatpush2.bf16.xpose.msra.mxu0 0
  %317 = vmatprep.subr.bf16.mxu0 0
  %318 = vmatpush2.bf16.xpose.msra.mxu0 0
  %319 = vmatprep.subr.bf16.mxu0 0
  %320 = vmatpush2.bf16.xpose.msra.mxu0 0
  %321 = vmatprep.subr.bf16.mxu0 0
  %322 = vmatpush2.bf16.xpose.msra.mxu0 0
  %323 = vmatprep.subr.bf16.mxu0 0
  %324 = vmatpush2.bf16.xpose.msra.mxu0 0
  %325 = vmatprep.subr.bf16.mxu0 0
  %326 = vmatpush2.bf16.xpose.msra.mxu0 0
  %327 = vmatprep.mubr.bf16.mxu0 0
  %328 = vmatmul.mubr.bf16.gmra.mxu0 %v290
  %v329 = vpop.f32.mrf.mxu0
  %v330 = vadd.f32 %v50, %v329
  %v331 = vpop.f32.mrf.mxu0
  %v332 = vpop.f32.mrf.mxu0
  %v333 = vadd.f32 %v51, %v332
  %v334 = vpop.f32.mrf.mxu0
  %335 = vdwg.mxu0
  %337 = vrot.lane.b32.xlu0 %v233, 96
  %v338 = vpop.permute.xlu0 %337
  %v340 = vsel %vm238, %v233, 0
  %v343 = vsel %vm238, %v338, 0
  %345 = vmatprep.subr.bf16.mxu0 0
  %346 = vmatpush1.bf16.xpose.msra.mxu0 0
  %347 = vmatprep.subr.bf16.mxu0 0
  %348 = vmatpush1.bf16.xpose.msra.mxu0 0
  %349 = vmatprep.subr.bf16.mxu0 0
  %350 = vmatpush1.bf16.xpose.msra.mxu0 0
  %351 = vmatprep.subr.bf16.mxu0 0
  %352 = vmatpush1.bf16.xpose.msra.mxu0 0
  %353 = vmatprep.subr.bf16.mxu0 0
  %354 = vmatpush1.bf16.xpose.msra.mxu0 0
  %355 = vmatprep.subr.bf16.mxu0 0
  %356 = vmatpush1.bf16.xpose.msra.mxu0 0
  %357 = vmatprep.subr.bf16.mxu0 0
  %358 = vmatpush1.bf16.xpose.msra.mxu0 0
  %359 = vmatprep.subr.bf16.mxu0 0
  %360 = vmatpush1.bf16.xpose.msra.mxu0 %v343
  %361 = vmatprep.subr.bf16.mxu0 0
  %362 = vmatpush2.bf16.xpose.msra.mxu0 0
  %363 = vmatprep.subr.bf16.mxu0 0
  %364 = vmatpush2.bf16.xpose.msra.mxu0 0
  %365 = vmatprep.subr.bf16.mxu0 0
  %366 = vmatpush2.bf16.xpose.msra.mxu0 0
  %367 = vmatprep.subr.bf16.mxu0 0
  %368 = vmatpush2.bf16.xpose.msra.mxu0 0
  %369 = vmatprep.subr.bf16.mxu0 0
  %370 = vmatpush2.bf16.xpose.msra.mxu0 0
  %371 = vmatprep.subr.bf16.mxu0 0
  %372 = vmatpush2.bf16.xpose.msra.mxu0 0
  %373 = vmatprep.subr.bf16.mxu0 0
  %374 = vmatpush2.bf16.xpose.msra.mxu0 0
  %375 = vmatprep.subr.bf16.mxu0 0
  %376 = vmatpush2.bf16.xpose.msra.mxu0 0
  %377 = vmatprep.mubr.bf16.mxu0 0
  %378 = vmatmul.mubr.bf16.gmra.mxu0 %v340
  %v379 = vpop.f32.mrf.mxu0
  %v380 = vadd.f32 %v50, %v379
  %v381 = vpop.f32.mrf.mxu0
  %v382 = vpop.f32.mrf.mxu0
  %v383 = vadd.f32 %v51, %v382
  %v384 = vpop.f32.mrf.mxu0
  %385 = vdwg.mxu0
  %387 = vrot.lane.b32.xlu0 %v234, 96
  %v388 = vpop.permute.xlu0 %387
  %v390 = vsel %vm238, %v234, 0
  %v393 = vsel %vm238, %v388, 0
  %395 = vmatprep.subr.bf16.mxu0 0
  %396 = vmatpush1.bf16.xpose.msra.mxu0 0
  %397 = vmatprep.subr.bf16.mxu0 0
  %398 = vmatpush1.bf16.xpose.msra.mxu0 0
  %399 = vmatprep.subr.bf16.mxu0 0
  %400 = vmatpush1.bf16.xpose.msra.mxu0 0
  %401 = vmatprep.subr.bf16.mxu0 0
  %402 = vmatpush1.bf16.xpose.msra.mxu0 0
  %403 = vmatprep.subr.bf16.mxu0 0
  %404 = vmatpush1.bf16.xpose.msra.mxu0 0
  %405 = vmatprep.subr.bf16.mxu0 0
  %406 = vmatpush1.bf16.xpose.msra.mxu0 0
  %407 = vmatprep.subr.bf16.mxu0 0
  %408 = vmatpush1.bf16.xpose.msra.mxu0 0
  %409 = vmatprep.subr.bf16.mxu0 0
  %410 = vmatpush1.bf16.xpose.msra.mxu0 %v393
  %411 = vmatprep.subr.bf16.mxu0 0
  %412 = vmatpush2.bf16.xpose.msra.mxu0 0
  %413 = vmatprep.subr.bf16.mxu0 0
  %414 = vmatpush2.bf16.xpose.msra.mxu0 0
  %415 = vmatprep.subr.bf16.mxu0 0
  %416 = vmatpush2.bf16.xpose.msra.mxu0 0
  %417 = vmatprep.subr.bf16.mxu0 0
  %418 = vmatpush2.bf16.xpose.msra.mxu0 0
  %419 = vmatprep.subr.bf16.mxu0 0
  %420 = vmatpush2.bf16.xpose.msra.mxu0 0
  %421 = vmatprep.subr.bf16.mxu0 0
  %422 = vmatpush2.bf16.xpose.msra.mxu0 0
  %423 = vmatprep.subr.bf16.mxu0 0
  %424 = vmatpush2.bf16.xpose.msra.mxu0 0
  %425 = vmatprep.subr.bf16.mxu0 0
  %426 = vmatpush2.bf16.xpose.msra.mxu0 0
  %427 = vmatprep.mubr.bf16.mxu0 0
  %428 = vmatmul.mubr.bf16.gmra.mxu0 %v390
  %v429 = vpop.f32.mrf.mxu0
  %v430 = vadd.f32 %v50, %v429
  %v431 = vpop.f32.mrf.mxu0
  %v432 = vpop.f32.mrf.mxu0
  %v433 = vadd.f32 %v51, %v432
  %v434 = vpop.f32.mrf.mxu0
  %435 = vdwg.mxu0
  %vm436 = vcmask 130048
  %v437 = vsel %vm436, %v280, -inf
  %438 = vmax.xlane.f32.xlu0 %v437
  %v439 = vpop.xlane.xlu0 %438
  %v440 = vsel %vm436, %v283, -inf
  %441 = vmax.xlane.f32.xlu0 %v440
  %v442 = vpop.xlane.xlu0 %441
  %v443 = vsel %vm436, %v330, -inf
  %444 = vmax.xlane.f32.xlu0 %v443
  %v445 = vpop.xlane.xlu0 %444
  %v446 = vsel %vm436, %v333, -inf
  %447 = vmax.xlane.f32.xlu0 %v446
  %v448 = vpop.xlane.xlu0 %447
  %v449 = vsel %vm436, %v380, -inf
  %450 = vmax.xlane.f32.xlu0 %v449
  %v451 = vpop.xlane.xlu0 %450
  %v452 = vsel %vm436, %v383, -inf
  %453 = vmax.xlane.f32.xlu0 %v452
  %v454 = vpop.xlane.xlu0 %453
  %v455 = vsel %vm436, %v430, -inf
  %456 = vmax.xlane.f32.xlu0 %v455
  %v457 = vpop.xlane.xlu0 %456
  %v458 = vsel %vm436, %v433, -inf
  %459 = vmax.xlane.f32.xlu0 %v458
  %v460 = vpop.xlane.xlu0 %459
  %v461 = vsub.f32 %v280, %v439
  %v462 = vsub.f32 %v283, %v442
  %v463 = vsub.f32 %v330, %v445
  %v464 = vsub.f32 %v333, %v448
  %v465 = vsub.f32 %v380, %v451
  %v466 = vsub.f32 %v383, %v454
  %v467 = vsub.f32 %v430, %v457
  %v468 = vsub.f32 %v433, %v460
  %v469 = vmul.f32 %v461, 1.442695
  %v470 = vpow.pop %v469
  %v471 = vmul.f32 %v462, 1.442695
  %v472 = vpow.pop %v471
  %v473 = vmul.f32 %v463, 1.442695
  %v474 = vpow.pop %v473
  %v475 = vmul.f32 %v464, 1.442695
  %v476 = vpow.pop %v475
  %v477 = vmul.f32 %v465, 1.442695
  %v478 = vpow.pop %v477
  %v479 = vmul.f32 %v466, 1.442695
  %v480 = vpow.pop %v479
  %v481 = vmul.f32 %v467, 1.442695
  %v482 = vpow.pop %v481
  %v483 = vmul.f32 %v468, 1.442695
  %v484 = vpow.pop %v483
  %v485 = vsel %vm436, %v470, 0.0
  %486 = vadd.xlane.f32.xlu0 %v485
  %v487 = vpop.xlane.xlu0 %486
  %v488 = vsel %vm436, %v472, 0.0
  %489 = vadd.xlane.f32.xlu0 %v488
  %v490 = vpop.xlane.xlu0 %489
  %v491 = vsel %vm436, %v474, 0.0
  %492 = vadd.xlane.f32.xlu0 %v491
  %v493 = vpop.xlane.xlu0 %492
  %v494 = vsel %vm436, %v476, 0.0
  %495 = vadd.xlane.f32.xlu0 %v494
  %v496 = vpop.xlane.xlu0 %495
  %v497 = vsel %vm436, %v478, 0.0
  %498 = vadd.xlane.f32.xlu0 %v497
  %v499 = vpop.xlane.xlu0 %498
  %v500 = vsel %vm436, %v480, 0.0
  %501 = vadd.xlane.f32.xlu0 %v500
  %v502 = vpop.xlane.xlu0 %501
  %v503 = vsel %vm436, %v482, 0.0
  %504 = vadd.xlane.f32.xlu0 %v503
  %v505 = vpop.xlane.xlu0 %504
  %v506 = vsel %vm436, %v484, 0.0
  %507 = vadd.xlane.f32.xlu0 %v506
  %v508 = vpop.xlane.xlu0 %507
  %v509 = vrcp.pop %v487
  %v510 = vrcp.pop %v490
  %v511 = vrcp.pop %v493
  %v512 = vrcp.pop %v496
  %v513 = vrcp.pop %v499
  %v514 = vrcp.pop %v502
  %v515 = vrcp.pop %v505
  %v516 = vrcp.pop %v508
  %v517 = vmul.f32 %v470, %v509
  %v518 = vmul.f32 %v472, %v510
  %v519 = vmul.f32 %v474, %v511
  %v520 = vmul.f32 %v476, %v512
  %v521 = vmul.f32 %v478, %v513
  %v522 = vmul.f32 %v480, %v514
  %v523 = vmul.f32 %v482, %v515
  %v524 = vmul.f32 %v484, %v516
  %v525 = vpack.c.bf16 %v518, %v517
  %v526 = vpack.c.bf16 %v520, %v519
  %v527 = vpack.c.bf16 %v522, %v521
  %v528 = vpack.c.bf16 %v524, %v523
  %529 = vrot.lane.b32.xlu0 %v231, 64
  %v530 = vpop.permute.xlu0 %529
  %v533 = vsel %vm436, %v525, 0
  %535 = vmatprep.subr.bf16.mxu0 0
  %536 = vmatpush1.bf16.msra.mxu0 0
  %537 = vmatprep.subr.bf16.mxu0 0
  %538 = vmatpush1.bf16.msra.mxu0 0
  %539 = vmatprep.subr.bf16.mxu0 0
  %540 = vmatpush1.bf16.msra.mxu0 0
  %541 = vmatprep.subr.bf16.mxu0 0
  %542 = vmatpush1.bf16.msra.mxu0 0
  %543 = vmatprep.subr.bf16.mxu0 0
  %544 = vmatpush1.bf16.msra.mxu0 0
  %545 = vmatprep.subr.bf16.mxu0 0
  %546 = vmatpush1.bf16.msra.mxu0 0
  %547 = vmatprep.subr.bf16.mxu0 0
  %548 = vmatpush1.bf16.msra.mxu0 0
  %549 = vmatprep.subr.bf16.mxu0 0
  %550 = vmatpush1.bf16.msra.mxu0 %v530
  %551 = vmatprep.subr.bf16.mxu0 0
  %552 = vmatpush2.bf16.msra.mxu0 0
  %553 = vmatprep.subr.bf16.mxu0 0
  %554 = vmatpush2.bf16.msra.mxu0 0
  %555 = vmatprep.subr.bf16.mxu0 0
  %556 = vmatpush2.bf16.msra.mxu0 0
  %557 = vmatprep.subr.bf16.mxu0 0
  %558 = vmatpush2.bf16.msra.mxu0 0
  %559 = vmatprep.subr.bf16.mxu0 0
  %560 = vmatpush2.bf16.msra.mxu0 0
  %561 = vmatprep.subr.bf16.mxu0 0
  %562 = vmatpush2.bf16.msra.mxu0 0
  %563 = vmatprep.subr.bf16.mxu0 0
  %564 = vmatpush2.bf16.msra.mxu0 0
  %565 = vmatprep.subr.bf16.mxu0 0
  %566 = vmatpush2.bf16.msra.mxu0 0
  %567 = vmatprep.mubr.bf16.mxu0 0
  %568 = vmatmul.mubr.bf16.gmra.mxu0 %v533
  %v569 = vpop.f32.mrf.mxu0
  %v570 = vadd.f32 0.0, %v569
  %v571 = vpop.f32.mrf.mxu0
  %v572 = vpop.f32.mrf.mxu0
  %v573 = vadd.f32 0.0, %v572
  %v574 = vpop.f32.mrf.mxu0
  %575 = vdwg.mxu0
  %576 = vrot.lane.b32.xlu0 %v232, 64
  %v577 = vpop.permute.xlu0 %576
  %v580 = vsel %vm436, %v526, 0
  %582 = vmatprep.subr.bf16.mxu0 0
  %583 = vmatpush1.bf16.msra.mxu0 0
  %584 = vmatprep.subr.bf16.mxu0 0
  %585 = vmatpush1.bf16.msra.mxu0 0
  %586 = vmatprep.subr.bf16.mxu0 0
  %587 = vmatpush1.bf16.msra.mxu0 0
  %588 = vmatprep.subr.bf16.mxu0 0
  %589 = vmatpush1.bf16.msra.mxu0 0
  %590 = vmatprep.subr.bf16.mxu0 0
  %591 = vmatpush1.bf16.msra.mxu0 0
  %592 = vmatprep.subr.bf16.mxu0 0
  %593 = vmatpush1.bf16.msra.mxu0 0
  %594 = vmatprep.subr.bf16.mxu0 0
  %595 = vmatpush1.bf16.msra.mxu0 0
  %596 = vmatprep.subr.bf16.mxu0 0
  %597 = vmatpush1.bf16.msra.mxu0 %v577
  %598 = vmatprep.subr.bf16.mxu0 0
  %599 = vmatpush2.bf16.msra.mxu0 0
  %600 = vmatprep.subr.bf16.mxu0 0
  %601 = vmatpush2.bf16.msra.mxu0 0
  %602 = vmatprep.subr.bf16.mxu0 0
  %603 = vmatpush2.bf16.msra.mxu0 0
  %604 = vmatprep.subr.bf16.mxu0 0
  %605 = vmatpush2.bf16.msra.mxu0 0
  %606 = vmatprep.subr.bf16.mxu0 0
  %607 = vmatpush2.bf16.msra.mxu0 0
  %608 = vmatprep.subr.bf16.mxu0 0
  %609 = vmatpush2.bf16.msra.mxu0 0
  %610 = vmatprep.subr.bf16.mxu0 0
  %611 = vmatpush2.bf16.msra.mxu0 0
  %612 = vmatprep.subr.bf16.mxu0 0
  %613 = vmatpush2.bf16.msra.mxu0 0
  %614 = vmatprep.mubr.bf16.mxu0 0
  %615 = vmatmul.mubr.bf16.gmra.mxu0 %v580
  %v616 = vpop.f32.mrf.mxu0
  %v617 = vadd.f32 0.0, %v616
  %v618 = vpop.f32.mrf.mxu0
  %v619 = vpop.f32.mrf.mxu0
  %v620 = vadd.f32 0.0, %v619
  %v621 = vpop.f32.mrf.mxu0
  %622 = vdwg.mxu0
  %623 = vrot.lane.b32.xlu0 %v233, 64
  %v624 = vpop.permute.xlu0 %623
  %v627 = vsel %vm436, %v527, 0
  %629 = vmatprep.subr.bf16.mxu0 0
  %630 = vmatpush1.bf16.msra.mxu0 0
  %631 = vmatprep.subr.bf16.mxu0 0
  %632 = vmatpush1.bf16.msra.mxu0 0
  %633 = vmatprep.subr.bf16.mxu0 0
  %634 = vmatpush1.bf16.msra.mxu0 0
  %635 = vmatprep.subr.bf16.mxu0 0
  %636 = vmatpush1.bf16.msra.mxu0 0
  %637 = vmatprep.subr.bf16.mxu0 0
  %638 = vmatpush1.bf16.msra.mxu0 0
  %639 = vmatprep.subr.bf16.mxu0 0
  %640 = vmatpush1.bf16.msra.mxu0 0
  %641 = vmatprep.subr.bf16.mxu0 0
  %642 = vmatpush1.bf16.msra.mxu0 0
  %643 = vmatprep.subr.bf16.mxu0 0
  %644 = vmatpush1.bf16.msra.mxu0 %v624
  %645 = vmatprep.subr.bf16.mxu0 0
  %646 = vmatpush2.bf16.msra.mxu0 0
  %647 = vmatprep.subr.bf16.mxu0 0
  %648 = vmatpush2.bf16.msra.mxu0 0
  %649 = vmatprep.subr.bf16.mxu0 0
  %650 = vmatpush2.bf16.msra.mxu0 0
  %651 = vmatprep.subr.bf16.mxu0 0
  %652 = vmatpush2.bf16.msra.mxu0 0
  %653 = vmatprep.subr.bf16.mxu0 0
  %654 = vmatpush2.bf16.msra.mxu0 0
  %655 = vmatprep.subr.bf16.mxu0 0
  %656 = vmatpush2.bf16.msra.mxu0 0
  %657 = vmatprep.subr.bf16.mxu0 0
  %658 = vmatpush2.bf16.msra.mxu0 0
  %659 = vmatprep.subr.bf16.mxu0 0
  %660 = vmatpush2.bf16.msra.mxu0 0
  %661 = vmatprep.mubr.bf16.mxu0 0
  %662 = vmatmul.mubr.bf16.gmra.mxu0 %v627
  %v663 = vpop.f32.mrf.mxu0
  %v664 = vadd.f32 0.0, %v663
  %v665 = vpop.f32.mrf.mxu0
  %v666 = vpop.f32.mrf.mxu0
  %v667 = vadd.f32 0.0, %v666
  %v668 = vpop.f32.mrf.mxu0
  %669 = vdwg.mxu0
  %670 = vrot.lane.b32.xlu0 %v234, 64
  %v671 = vpop.permute.xlu0 %670
  %v674 = vsel %vm436, %v528, 0
  %676 = vmatprep.subr.bf16.mxu0 0
  %677 = vmatpush1.bf16.msra.mxu0 0
  %678 = vmatprep.subr.bf16.mxu0 0
  %679 = vmatpush1.bf16.msra.mxu0 0
  %680 = vmatprep.subr.bf16.mxu0 0
  %681 = vmatpush1.bf16.msra.mxu0 0
  %682 = vmatprep.subr.bf16.mxu0 0
  %683 = vmatpush1.bf16.msra.mxu0 0
  %684 = vmatprep.subr.bf16.mxu0 0
  %685 = vmatpush1.bf16.msra.mxu0 0
  %686 = vmatprep.subr.bf16.mxu0 0
  %687 = vmatpush1.bf16.msra.mxu0 0
  %688 = vmatprep.subr.bf16.mxu0 0
  %689 = vmatpush1.bf16.msra.mxu0 0
  %690 = vmatprep.subr.bf16.mxu0 0
  %691 = vmatpush1.bf16.msra.mxu0 %v671
  %692 = vmatprep.subr.bf16.mxu0 0
  %693 = vmatpush2.bf16.msra.mxu0 0
  %694 = vmatprep.subr.bf16.mxu0 0
  %695 = vmatpush2.bf16.msra.mxu0 0
  %696 = vmatprep.subr.bf16.mxu0 0
  %697 = vmatpush2.bf16.msra.mxu0 0
  %698 = vmatprep.subr.bf16.mxu0 0
  %699 = vmatpush2.bf16.msra.mxu0 0
  %700 = vmatprep.subr.bf16.mxu0 0
  %701 = vmatpush2.bf16.msra.mxu0 0
  %702 = vmatprep.subr.bf16.mxu0 0
  %703 = vmatpush2.bf16.msra.mxu0 0
  %704 = vmatprep.subr.bf16.mxu0 0
  %705 = vmatpush2.bf16.msra.mxu0 0
  %706 = vmatprep.subr.bf16.mxu0 0
  %707 = vmatpush2.bf16.msra.mxu0 0
  %708 = vmatprep.mubr.bf16.mxu0 0
  %709 = vmatmul.mubr.bf16.gmra.mxu0 %v674
  %v710 = vpop.f32.mrf.mxu0
  %v711 = vadd.f32 0.0, %v710
  %v712 = vpop.f32.mrf.mxu0
  %v713 = vpop.f32.mrf.mxu0
  %v714 = vadd.f32 0.0, %v713
  %v715 = vpop.f32.mrf.mxu0
  %716 = vdwg.mxu0
  %719 = vrot.lane.b32.xlu0 %v617, 8
  %v720 = vpop.permute.xlu0 %719
  %721 = vrot.lane.b32.xlu0 %v620, 8
  %v722 = vpop.permute.xlu0 %721
  %727 = vrot.lane.b32.xlu0 %v664, 16
  %v728 = vpop.permute.xlu0 %727
  %729 = vrot.lane.b32.xlu0 %v667, 16
  %v730 = vpop.permute.xlu0 %729
  %735 = vrot.lane.b32.xlu0 %v711, 24
  %v736 = vpop.permute.xlu0 %735
  %737 = vrot.lane.b32.xlu0 %v714, 24
  %v738 = vpop.permute.xlu0 %737
  %v741 = vsel %vm238, %v570, %v720
  %v742 = vsel %vm238, %v573, %v722
  %v743 = vsel %vm436, %v741, %v728
  %v744 = vsel %vm436, %v742, %v730
  %vm745 = vcmask 195584
  %v746 = vsel %vm745, %v743, %v736
  %v747 = vsel %vm745, %v744, %v738
  %v748 = vpack.c.bf16 %v747, %v746
  %v749 = vld [vmem:[%s7] sm:$0xf]
  %v750 = vld [vmem:[%s7 + $0x4] sm:$0xf]
  %v751 = vld [vmem:[%s7 + $0x8] sm:$0xf]
  %v752 = vld [vmem:[%s7 + $0xc] sm:$0xf]
  %v753 = vld [vmem:[%s8] sm:$0x1]
  %v755 = vlaneseq
  %v756 = vshrl.u32 %v755, 7
  %v757 = vsub.s32 0, %v756
  %v758 = vrot.slane %v753, %v757
  %v764 = vunpack.c.l.b16 %v749
  %v765 = vunpack.c.l.b16 %v750
  %v766 = vunpack.c.l.b16 %v751
  %v767 = vunpack.c.l.b16 %v752
  %v768 = vpack.c.b16 %v765, %v764
  %v769 = vpack.c.b16 %v767, %v766
  %v773 = vsel %vm52, %v748, 0
  %775 = vmatprep.subr.bf16.mxu0 0
  %776 = vmatpush1.bf16.msra.mxu0 0
  %777 = vmatprep.subr.bf16.mxu0 0
  %778 = vmatpush1.bf16.msra.mxu0 0
  %779 = vmatprep.subr.bf16.mxu0 0
  %780 = vmatpush1.bf16.msra.mxu0 0
  %781 = vmatprep.subr.bf16.mxu0 0
  %782 = vmatpush1.bf16.msra.mxu0 0
  %783 = vmatprep.subr.bf16.mxu0 0
  %784 = vmatpush1.bf16.msra.mxu0 0
  %785 = vmatprep.subr.bf16.mxu0 0
  %786 = vmatpush1.bf16.msra.mxu0 0
  %787 = vmatprep.subr.bf16.mxu0 0
  %788 = vmatpush1.bf16.msra.mxu0 %v769
  %789 = vmatprep.subr.bf16.mxu0 0
  %790 = vmatpush1.bf16.msra.mxu0 %v768
  %791 = vmatprep.subr.bf16.mxu0 0
  %792 = vmatpush2.bf16.msra.mxu0 0
  %793 = vmatprep.subr.bf16.mxu0 0
  %794 = vmatpush2.bf16.msra.mxu0 0
  %795 = vmatprep.subr.bf16.mxu0 0
  %796 = vmatpush2.bf16.msra.mxu0 0
  %797 = vmatprep.subr.bf16.mxu0 0
  %798 = vmatpush2.bf16.msra.mxu0 0
  %799 = vmatprep.subr.bf16.mxu0 0
  %800 = vmatpush2.bf16.msra.mxu0 0
  %801 = vmatprep.subr.bf16.mxu0 0
  %802 = vmatpush2.bf16.msra.mxu0 0
  %803 = vmatprep.subr.bf16.mxu0 0
  %804 = vmatpush2.bf16.msra.mxu0 0
  %805 = vmatprep.subr.bf16.mxu0 0
  %806 = vmatpush2.bf16.msra.mxu0 0
  %807 = vmatprep.mubr.bf16.mxu0 0
  %808 = vmatmul.mubr.bf16.gmra.mxu0 %v773
  %v809 = vpop.f32.mrf.mxu0
  %v810 = vadd.f32 %v758, %v809
  %v811 = vpop.f32.mrf.mxu0
  %v812 = vpop.f32.mrf.mxu0
  %v813 = vadd.f32 %v758, %v812
  %v814 = vpop.f32.mrf.mxu0
  %815 = vdwg.mxu0
  %v816 = vadd.f32 %v102, %v810
  %v817 = vadd.f32 %v103, %v813
  %v818 = vsel %vm52, %v816, 0.0
  %819 = vadd.xlane.f32.xlu0 %v818
  %v820 = vpop.xlane.xlu0 %819
  %v821 = vsel %vm52, %v817, 0.0
  %822 = vadd.xlane.f32.xlu0 %v821
  %v823 = vpop.xlane.xlu0 %822
  %v824 = vmul.f32 %v820, %v59
  %v825 = vmul.f32 %v823, %v59
  %v826 = vsub.f32 %v816, %v824
  %v827 = vsub.f32 %v817, %v825
  %v828 = vmul.f32 %v826, %v826
  %v829 = vmul.f32 %v827, %v827
  %v830 = vsel %vm52, %v828, 0.0
  %831 = vadd.xlane.f32.xlu0 %v830
  %v832 = vpop.xlane.xlu0 %831
  %v833 = vsel %vm52, %v829, 0.0
  %834 = vadd.xlane.f32.xlu0 %v833
  %v835 = vpop.xlane.xlu0 %834
  %v836 = vmul.f32 %v832, %v59
  %v837 = vmul.f32 %v835, %v59
  %v838 = vadd.f32 %v836, 1e-05
  %v839 = vadd.f32 %v837, 1e-05
  %v840 = vrsqrt.pop %v838
  %v841 = vrsqrt.pop %v839
  %v842 = vmul.f32 %v826, %v840
  %v843 = vmul.f32 %v827, %v841
  %v844 = vlaneseq
  %v845 = vshrl.u32 %v844, 7
  %v846 = vsub.s32 2, %v845
  %v847 = vrot.slane %v104, %v846
  %v848 = vmul.f32 %v842, %v847
  %v849 = vmul.f32 %v843, %v847
  %v850 = vlaneseq
  %v851 = vshrl.u32 %v850, 7
  %v852 = vsub.s32 3, %v851
  %v853 = vrot.slane %v104, %v852
  %v854 = vadd.f32 %v848, %v853
  %v855 = vadd.f32 %v849, %v853
  %v856 = vpack.c.bf16 %v855, %v854
  %v857 = vld [vmem:[%s9] sm:$0xf]
  %v858 = vld [vmem:[%s9 + $0x4] sm:$0xf]
  %v859 = vld [vmem:[%s9 + $0x8] sm:$0xf]
  %v860 = vld [vmem:[%s9 + $0xc] sm:$0xf]
  %v861 = vld [vmem:[%s10] sm:$0x1]
  %v863 = vlaneseq
  %v864 = vshrl.u32 %v863, 7
  %v865 = vsub.s32 0, %v864
  %v866 = vrot.slane %v861, %v865
  %v872 = vunpack.c.l.b16 %v857
  %v873 = vunpack.c.l.b16 %v858
  %v874 = vunpack.c.l.b16 %v859
  %v875 = vunpack.c.l.b16 %v860
  %v876 = vpack.c.b16 %v873, %v872
  %v877 = vpack.c.b16 %v875, %v874
  %v881 = vsel %vm52, %v856, 0
  %883 = vmatprep.subr.bf16.mxu0 0
  %884 = vmatpush1.bf16.msra.mxu0 0
  %885 = vmatprep.subr.bf16.mxu0 0
  %886 = vmatpush1.bf16.msra.mxu0 0
  %887 = vmatprep.subr.bf16.mxu0 0
  %888 = vmatpush1.bf16.msra.mxu0 0
  %889 = vmatprep.subr.bf16.mxu0 0
  %890 = vmatpush1.bf16.msra.mxu0 0
  %891 = vmatprep.subr.bf16.mxu0 0
  %892 = vmatpush1.bf16.msra.mxu0 0
  %893 = vmatprep.subr.bf16.mxu0 0
  %894 = vmatpush1.bf16.msra.mxu0 0
  %895 = vmatprep.subr.bf16.mxu0 0
  %896 = vmatpush1.bf16.msra.mxu0 %v877
  %897 = vmatprep.subr.bf16.mxu0 0
  %898 = vmatpush1.bf16.msra.mxu0 %v876
  %899 = vmatprep.subr.bf16.mxu0 0
  %900 = vmatpush2.bf16.msra.mxu0 0
  %901 = vmatprep.subr.bf16.mxu0 0
  %902 = vmatpush2.bf16.msra.mxu0 0
  %903 = vmatprep.subr.bf16.mxu0 0
  %904 = vmatpush2.bf16.msra.mxu0 0
  %905 = vmatprep.subr.bf16.mxu0 0
  %906 = vmatpush2.bf16.msra.mxu0 0
  %907 = vmatprep.subr.bf16.mxu0 0
  %908 = vmatpush2.bf16.msra.mxu0 0
  %909 = vmatprep.subr.bf16.mxu0 0
  %910 = vmatpush2.bf16.msra.mxu0 0
  %911 = vmatprep.subr.bf16.mxu0 0
  %912 = vmatpush2.bf16.msra.mxu0 0
  %913 = vmatprep.subr.bf16.mxu0 0
  %914 = vmatpush2.bf16.msra.mxu0 0
  %915 = vmatprep.mubr.bf16.mxu0 0
  %916 = vmatmul.mubr.bf16.gmra.mxu0 %v881
  %v917 = vpop.f32.mrf.mxu0
  %v918 = vadd.f32 %v866, %v917
  %v919 = vpop.f32.mrf.mxu0
  %v920 = vpop.f32.mrf.mxu0
  %v921 = vadd.f32 %v866, %v920
  %v922 = vpop.f32.mrf.mxu0
  %923 = vdwg.mxu0
  %v924 = vmax.f32 %v918, 0.0
  %v925 = vmax.f32 %v921, 0.0
  %v926 = vpack.c.bf16 %v925, %v924
  %v927 = vld [vmem:[%s11] sm:$0xf]
  %v928 = vld [vmem:[%s11 + $0x4] sm:$0xf]
  %v929 = vld [vmem:[%s11 + $0x8] sm:$0xf]
  %v930 = vld [vmem:[%s11 + $0xc] sm:$0xf]
  %v931 = vld [vmem:[%s11 + $0x10] sm:$0xf]
  %v932 = vld [vmem:[%s11 + $0x14] sm:$0xf]
  %v933 = vld [vmem:[%s11 + $0x18] sm:$0xf]
  %v934 = vld [vmem:[%s11 + $0x1c] sm:$0xf]
  %v935 = vld [vmem:[%s12] sm:$0x1]
  %v937 = vlaneseq
  %v938 = vshrl.u32 %v937, 7
  %v939 = vsub.s32 0, %v938
  %v940 = vrot.slane %v935, %v939
  %v950 = vunpack.c.l.b16 %v927
  %v951 = vunpack.c.l.b16 %v928
  %v952 = vunpack.c.l.b16 %v929
  %v953 = vunpack.c.l.b16 %v930
  %v954 = vunpack.c.l.b16 %v931
  %v955 = vunpack.c.l.b16 %v932
  %v956 = vunpack.c.l.b16 %v933
  %v957 = vunpack.c.l.b16 %v934
  %v958 = vpack.c.b16 %v951, %v950
  %v959 = vpack.c.b16 %v953, %v952
  %v960 = vpack.c.b16 %v955, %v954
  %v961 = vpack.c.b16 %v957, %v956
  %vm966 = vcmask 523264
  %v968 = vsel %vm966, %v926, 0
  %970 = vmatprep.subr.bf16.mxu0 0
  %971 = vmatpush1.bf16.msra.mxu0 0
  %972 = vmatprep.subr.bf16.mxu0 0
  %973 = vmatpush1.bf16.msra.mxu0 0
  %974 = vmatprep.subr.bf16.mxu0 0
  %975 = vmatpush1.bf16.msra.mxu0 0
  %976 = vmatprep.subr.bf16.mxu0 0
  %977 = vmatpush1.bf16.msra.mxu0 0
  %978 = vmatprep.subr.bf16.mxu0 0
  %979 = vmatpush1.bf16.msra.mxu0 %v961
  %980 = vmatprep.subr.bf16.mxu0 0
  %981 = vmatpush1.bf16.msra.mxu0 %v960
  %982 = vmatprep.subr.bf16.mxu0 0
  %983 = vmatpush1.bf16.msra.mxu0 %v959
  %984 = vmatprep.subr.bf16.mxu0 0
  %985 = vmatpush1.bf16.msra.mxu0 %v958
  %986 = vmatprep.subr.bf16.mxu0 0
  %987 = vmatpush2.bf16.msra.mxu0 0
  %988 = vmatprep.subr.bf16.mxu0 0
  %989 = vmatpush2.bf16.msra.mxu0 0
  %990 = vmatprep.subr.bf16.mxu0 0
  %991 = vmatpush2.bf16.msra.mxu0 0
  %992 = vmatprep.subr.bf16.mxu0 0
  %993 = vmatpush2.bf16.msra.mxu0 0
  %994 = vmatprep.subr.bf16.mxu0 0
  %995 = vmatpush2.bf16.msra.mxu0 0
  %996 = vmatprep.subr.bf16.mxu0 0
  %997 = vmatpush2.bf16.msra.mxu0 0
  %998 = vmatprep.subr.bf16.mxu0 0
  %999 = vmatpush2.bf16.msra.mxu0 0
  %1000 = vmatprep.subr.bf16.mxu0 0
  %1001 = vmatpush2.bf16.msra.mxu0 0
  %1002 = vmatprep.mubr.bf16.mxu0 0
  %1003 = vmatmul.mubr.bf16.gmra.mxu0 %v968
  %v1004 = vpop.f32.mrf.mxu0
  %v1005 = vadd.f32 %v940, %v1004
  %v1006 = vpop.f32.mrf.mxu0
  %v1007 = vpop.f32.mrf.mxu0
  %v1008 = vadd.f32 %v940, %v1007
  %v1009 = vpop.f32.mrf.mxu0
  %1010 = vdwg.mxu0
  %v1011 = vadd.f32 %v816, %v1005
  %v1012 = vadd.f32 %v817, %v1008
  %s1013 = scalar_lea.vmem %s4, 4
  %v1014 = vld [vmem:[%s1013] sm:$0xf]
  %s1015 = scalar_lea.vmem %s5, 16
  %v1016 = vld [vmem:[%s1015] sm:$0xf]
  %v1017 = vld [vmem:[%s1015 + $0x4] sm:$0xf]
  %v1018 = vld [vmem:[%s1015 + $0x8] sm:$0xf]
  %v1019 = vld [vmem:[%s1015 + $0xc] sm:$0xf]
  %v1020 = vsel %vm52, %v1011, 0.0
  %1021 = vadd.xlane.f32.xlu0 %v1020
  %v1022 = vpop.xlane.xlu0 %1021
  %v1023 = vsel %vm52, %v1012, 0.0
  %1024 = vadd.xlane.f32.xlu0 %v1023
  %v1025 = vpop.xlane.xlu0 %1024
  %v1026 = vmul.f32 %v1022, %v59
  %v1027 = vmul.f32 %v1025, %v59
  %v1028 = vsub.f32 %v1011, %v1026
  %v1029 = vsub.f32 %v1012, %v1027
  %v1030 = vmul.f32 %v1028, %v1028
  %v1031 = vmul.f32 %v1029, %v1029
  %v1032 = vsel %vm52, %v1030, 0.0
  %1033 = vadd.xlane.f32.xlu0 %v1032
  %v1034 = vpop.xlane.xlu0 %1033
  %v1035 = vsel %vm52, %v1031, 0.0
  %1036 = vadd.xlane.f32.xlu0 %v1035
  %v1037 = vpop.xlane.xlu0 %1036
  %v1038 = vmul.f32 %v1034, %v59
  %v1039 = vmul.f32 %v1037, %v59
  %v1040 = vadd.f32 %v1038, 1e-05
  %v1041 = vadd.f32 %v1039, 1e-05
  %v1042 = vrsqrt.pop %v1040
  %v1043 = vrsqrt.pop %v1041
  %v1044 = vmul.f32 %v1028, %v1042
  %v1045 = vmul.f32 %v1029, %v1043
  %v1046 = vlaneseq
  %v1047 = vshrl.u32 %v1046, 7
  %v1048 = vsub.s32 0, %v1047
  %v1049 = vrot.slane %v1014, %v1048
  %v1050 = vmul.f32 %v1044, %v1049
  %v1051 = vmul.f32 %v1045, %v1049
  %v1052 = vlaneseq
  %v1053 = vshrl.u32 %v1052, 7
  %v1054 = vsub.s32 1, %v1053
  %v1055 = vrot.slane %v1014, %v1054
  %v1056 = vadd.f32 %v1050, %v1055
  %v1057 = vadd.f32 %v1051, %v1055
  %v1058 = vpack.c.bf16 %v1057, %v1056
  %s1059 = scalar_lea.vmem %s6, 1
  %v1060 = vld [vmem:[%s1059] sm:$0x1]
  %v1062 = vlaneseq
  %v1063 = vshrl.u32 %v1062, 7
  %v1064 = vsub.s32 0, %v1063
  %v1065 = vrot.slane %v1060, %v1064
  %v1071 = vunpack.c.l.b16 %v1016
  %v1072 = vunpack.c.l.b16 %v1017
  %v1073 = vunpack.c.l.b16 %v1018
  %v1074 = vunpack.c.l.b16 %v1019
  %v1075 = vpack.c.b16 %v1072, %v1071
  %v1076 = vpack.c.b16 %v1074, %v1073
  %v1080 = vsel %vm52, %v1058, 0
  %1082 = vmatprep.subr.bf16.mxu0 0
  %1083 = vmatpush1.bf16.msra.mxu0 0
  %1084 = vmatprep.subr.bf16.mxu0 0
  %1085 = vmatpush1.bf16.msra.mxu0 0
  %1086 = vmatprep.subr.bf16.mxu0 0
  %1087 = vmatpush1.bf16.msra.mxu0 0
  %1088 = vmatprep.subr.bf16.mxu0 0
  %1089 = vmatpush1.bf16.msra.mxu0 0
  %1090 = vmatprep.subr.bf16.mxu0 0
  %1091 = vmatpush1.bf16.msra.mxu0 0
  %1092 = vmatprep.subr.bf16.mxu0 0
  %1093 = vmatpush1.bf16.msra.mxu0 0
  %1094 = vmatprep.subr.bf16.mxu0 0
  %1095 = vmatpush1.bf16.msra.mxu0 %v1076
  %1096 = vmatprep.subr.bf16.mxu0 0
  %1097 = vmatpush1.bf16.msra.mxu0 %v1075
  %1098 = vmatprep.subr.bf16.mxu0 0
  %1099 = vmatpush2.bf16.msra.mxu0 0
  %1100 = vmatprep.subr.bf16.mxu0 0
  %1101 = vmatpush2.bf16.msra.mxu0 0
  %1102 = vmatprep.subr.bf16.mxu0 0
  %1103 = vmatpush2.bf16.msra.mxu0 0
  %1104 = vmatprep.subr.bf16.mxu0 0
  %1105 = vmatpush2.bf16.msra.mxu0 0
  %1106 = vmatprep.subr.bf16.mxu0 0
  %1107 = vmatpush2.bf16.msra.mxu0 0
  %1108 = vmatprep.subr.bf16.mxu0 0
  %1109 = vmatpush2.bf16.msra.mxu0 0
  %1110 = vmatprep.subr.bf16.mxu0 0
  %1111 = vmatpush2.bf16.msra.mxu0 0
  %1112 = vmatprep.subr.bf16.mxu0 0
  %1113 = vmatpush2.bf16.msra.mxu0 0
  %1114 = vmatprep.mubr.bf16.mxu0 0
  %1115 = vmatmul.mubr.bf16.gmra.mxu0 %v1080
  %v1116 = vpop.f32.mrf.mxu0
  %v1117 = vadd.f32 %v1065, %v1116
  %v1118 = vpop.f32.mrf.mxu0
  %v1119 = vpop.f32.mrf.mxu0
  %v1120 = vadd.f32 %v1065, %v1119
  %v1121 = vpop.f32.mrf.mxu0
  %1122 = vdwg.mxu0
  %1125 = vrot.lane.b32.xlu0 %v1117, 120
  %v1126 = vpop.permute.xlu0 %1125
  %1127 = vrot.lane.b32.xlu0 %v1120, 120
  %v1128 = vpop.permute.xlu0 %1127
  %1131 = vrot.lane.b32.xlu0 %v1117, 112
  %v1132 = vpop.permute.xlu0 %1131
  %1133 = vrot.lane.b32.xlu0 %v1120, 112
  %v1134 = vpop.permute.xlu0 %1133
  %1137 = vrot.lane.b32.xlu0 %v1117, 104
  %v1138 = vpop.permute.xlu0 %1137
  %1139 = vrot.lane.b32.xlu0 %v1120, 104
  %v1140 = vpop.permute.xlu0 %1139
  %v1143 = vpack.c.bf16 %v1120, %v1117
  %v1144 = vpack.c.bf16 %v1128, %v1126
  %v1145 = vpack.c.bf16 %v1134, %v1132
  %v1146 = vpack.c.bf16 %v1140, %v1138
  %1148 = vrot.lane.b32.xlu0 %v1143, 96
  %v1149 = vpop.permute.xlu0 %1148
  %v1151 = vsel %vm238, %v1143, 0
  %v1154 = vsel %vm238, %v1149, 0
  %1156 = vmatprep.subr.bf16.mxu0 0
  %1157 = vmatpush1.bf16.xpose.msra.mxu0 0
  %1158 = vmatprep.subr.bf16.mxu0 0
  %1159 = vmatpush1.bf16.xpose.msra.mxu0 0
  %1160 = vmatprep.subr.bf16.mxu0 0
  %1161 = vmatpush1.bf16.xpose.msra.mxu0 0
  %1162 = vmatprep.subr.bf16.mxu0 0
  %1163 = vmatpush1.bf16.xpose.msra.mxu0 0
  %1164 = vmatprep.subr.bf16.mxu0 0
  %1165 = vmatpush1.bf16.xpose.msra.mxu0 0
  %1166 = vmatprep.subr.bf16.mxu0 0
  %1167 = vmatpush1.bf16.xpose.msra.mxu0 0
  %1168 = vmatprep.subr.bf16.mxu0 0
  %1169 = vmatpush1.bf16.xpose.msra.mxu0 0
  %1170 = vmatprep.subr.bf16.mxu0 0
  %1171 = vmatpush1.bf16.xpose.msra.mxu0 %v1154
  %1172 = vmatprep.subr.bf16.mxu0 0
  %1173 = vmatpush2.bf16.xpose.msra.mxu0 0
  %1174 = vmatprep.subr.bf16.mxu0 0
  %1175 = vmatpush2.bf16.xpose.msra.mxu0 0
  %1176 = vmatprep.subr.bf16.mxu0 0
  %1177 = vmatpush2.bf16.xpose.msra.mxu0 0
  %1178 = vmatprep.subr.bf16.mxu0 0
  %1179 = vmatpush2.bf16.xpose.msra.mxu0 0
  %1180 = vmatprep.subr.bf16.mxu0 0
  %1181 = vmatpush2.bf16.xpose.msra.mxu0 0
  %1182 = vmatprep.subr.bf16.mxu0 0
  %1183 = vmatpush2.bf16.xpose.msra.mxu0 0
  %1184 = vmatprep.subr.bf16.mxu0 0
  %1185 = vmatpush2.bf16.xpose.msra.mxu0 0
  %1186 = vmatprep.subr.bf16.mxu0 0
  %1187 = vmatpush2.bf16.xpose.msra.mxu0 0
  %1188 = vmatprep.mubr.bf16.mxu0 0
  %1189 = vmatmul.mubr.bf16.gmra.mxu0 %v1151
  %v1190 = vpop.f32.mrf.mxu0
  %v1191 = vadd.f32 %v50, %v1190
  %v1192 = vpop.f32.mrf.mxu0
  %v1193 = vpop.f32.mrf.mxu0
  %v1194 = vadd.f32 %v51, %v1193
  %v1195 = vpop.f32.mrf.mxu0
  %1196 = vdwg.mxu0
  %1198 = vrot.lane.b32.xlu0 %v1144, 96
  %v1199 = vpop.permute.xlu0 %1198
  %v1201 = vsel %vm238, %v1144, 0
  %v1204 = vsel %vm238, %v1199, 0
  %1206 = vmatprep.subr.bf16.mxu0 0
  %1207 = vmatpush1.bf16.xpose.msra.mxu0 0
  %1208 = vmatprep.subr.bf16.mxu0 0
  %1209 = vmatpush1.bf16.xpose.msra.mxu0 0
  %1210 = vmatprep.subr.bf16.mxu0 0
  %1211 = vmatpush1.bf16.xpose.msra.mxu0 0
  %1212 = vmatprep.subr.bf16.mxu0 0
  %1213 = vmatpush1.bf16.xpose.msra.mxu0 0
  %1214 = vmatprep.subr.bf16.mxu0 0
  %1215 = vmatpush1.bf16.xpose.msra.mxu0 0
  %1216 = vmatprep.subr.bf16.mxu0 0
  %1217 = vmatpush1.bf16.xpose.msra.mxu0 0
  %1218 = vmatprep.subr.bf16.mxu0 0
  %1219 = vmatpush1.bf16.xpose.msra.mxu0 0
  %1220 = vmatprep.subr.bf16.mxu0 0
  %1221 = vmatpush1.bf16.xpose.msra.mxu0 %v1204
  %1222 = vmatprep.subr.bf16.mxu0 0
  %1223 = vmatpush2.bf16.xpose.msra.mxu0 0
  %1224 = vmatprep.subr.bf16.mxu0 0
  %1225 = vmatpush2.bf16.xpose.msra.mxu0 0
  %1226 = vmatprep.subr.bf16.mxu0 0
  %1227 = vmatpush2.bf16.xpose.msra.mxu0 0
  %1228 = vmatprep.subr.bf16.mxu0 0
  %1229 = vmatpush2.bf16.xpose.msra.mxu0 0
  %1230 = vmatprep.subr.bf16.mxu0 0
  %1231 = vmatpush2.bf16.xpose.msra.mxu0 0
  %1232 = vmatprep.subr.bf16.mxu0 0
  %1233 = vmatpush2.bf16.xpose.msra.mxu0 0
  %1234 = vmatprep.subr.bf16.mxu0 0
  %1235 = vmatpush2.bf16.xpose.msra.mxu0 0
  %1236 = vmatprep.subr.bf16.mxu0 0
  %1237 = vmatpush2.bf16.xpose.msra.mxu0 0
  %1238 = vmatprep.mubr.bf16.mxu0 0
  %1239 = vmatmul.mubr.bf16.gmra.mxu0 %v1201
  %v1240 = vpop.f32.mrf.mxu0
  %v1241 = vadd.f32 %v50, %v1240
  %v1242 = vpop.f32.mrf.mxu0
  %v1243 = vpop.f32.mrf.mxu0
  %v1244 = vadd.f32 %v51, %v1243
  %v1245 = vpop.f32.mrf.mxu0
  %1246 = vdwg.mxu0
  %1248 = vrot.lane.b32.xlu0 %v1145, 96
  %v1249 = vpop.permute.xlu0 %1248
  %v1251 = vsel %vm238, %v1145, 0
  %v1254 = vsel %vm238, %v1249, 0
  %1256 = vmatprep.subr.bf16.mxu0 0
  %1257 = vmatpush1.bf16.xpose.msra.mxu0 0
  %1258 = vmatprep.subr.bf16.mxu0 0
  %1259 = vmatpush1.bf16.xpose.msra.mxu0 0
  %1260 = vmatprep.subr.bf16.mxu0 0
  %1261 = vmatpush1.bf16.xpose.msra.mxu0 0
  %1262 = vmatprep.subr.bf16.mxu0 0
  %1263 = vmatpush1.bf16.xpose.msra.mxu0 0
  %1264 = vmatprep.subr.bf16.mxu0 0
  %1265 = vmatpush1.bf16.xpose.msra.mxu0 0
  %1266 = vmatprep.subr.bf16.mxu0 0
  %1267 = vmatpush1.bf16.xpose.msra.mxu0 0
  %1268 = vmatprep.subr.bf16.mxu0 0
  %1269 = vmatpush1.bf16.xpose.msra.mxu0 0
  %1270 = vmatprep.subr.bf16.mxu0 0
  %1271 = vmatpush1.bf16.xpose.msra.mxu0 %v1254
  %1272 = vmatprep.subr.bf16.mxu0 0
  %1273 = vmatpush2.bf16.xpose.msra.mxu0 0
  %1274 = vmatprep.subr.bf16.mxu0 0
  %1275 = vmatpush2.bf16.xpose.msra.mxu0 0
  %1276 = vmatprep.subr.bf16.mxu0 0
  %1277 = vmatpush2.bf16.xpose.msra.mxu0 0
  %1278 = vmatprep.subr.bf16.mxu0 0
  %1279 = vmatpush2.bf16.xpose.msra.mxu0 0
  %1280 = vmatprep.subr.bf16.mxu0 0
  %1281 = vmatpush2.bf16.xpose.msra.mxu0 0
  %1282 = vmatprep.subr.bf16.mxu0 0
  %1283 = vmatpush2.bf16.xpose.msra.mxu0 0
  %1284 = vmatprep.subr.bf16.mxu0 0
  %1285 = vmatpush2.bf16.xpose.msra.mxu0 0
  %1286 = vmatprep.subr.bf16.mxu0 0
  %1287 = vmatpush2.bf16.xpose.msra.mxu0 0
  %1288 = vmatprep.mubr.bf16.mxu0 0
  %1289 = vmatmul.mubr.bf16.gmra.mxu0 %v1251
  %v1290 = vpop.f32.mrf.mxu0
  %v1291 = vadd.f32 %v50, %v1290
  %v1292 = vpop.f32.mrf.mxu0
  %v1293 = vpop.f32.mrf.mxu0
  %v1294 = vadd.f32 %v51, %v1293
  %v1295 = vpop.f32.mrf.mxu0
  %1296 = vdwg.mxu0
  %1298 = vrot.lane.b32.xlu0 %v1146, 96
  %v1299 = vpop.permute.xlu0 %1298
  %v1301 = vsel %vm238, %v1146, 0
  %v1304 = vsel %vm238, %v1299, 0
  %1306 = vmatprep.subr.bf16.mxu0 0
  %1307 = vmatpush1.bf16.xpose.msra.mxu0 0
  %1308 = vmatprep.subr.bf16.mxu0 0
  %1309 = vmatpush1.bf16.xpose.msra.mxu0 0
  %1310 = vmatprep.subr.bf16.mxu0 0
  %1311 = vmatpush1.bf16.xpose.msra.mxu0 0
  %1312 = vmatprep.subr.bf16.mxu0 0
  %1313 = vmatpush1.bf16.xpose.msra.mxu0 0
  %1314 = vmatprep.subr.bf16.mxu0 0
  %1315 = vmatpush1.bf16.xpose.msra.mxu0 0
  %1316 = vmatprep.subr.bf16.mxu0 0
  %1317 = vmatpush1.bf16.xpose.msra.mxu0 0
  %1318 = vmatprep.subr.bf16.mxu0 0
  %1319 = vmatpush1.bf16.xpose.msra.mxu0 0
  %1320 = vmatprep.subr.bf16.mxu0 0
  %1321 = vmatpush1.bf16.xpose.msra.mxu0 %v1304
  %1322 = vmatprep.subr.bf16.mxu0 0
  %1323 = vmatpush2.bf16.xpose.msra.mxu0 0
  %1324 = vmatprep.subr.bf16.mxu0 0
  %1325 = vmatpush2.bf16.xpose.msra.mxu0 0
  %1326 = vmatprep.subr.bf16.mxu0 0
  %1327 = vmatpush2.bf16.xpose.msra.mxu0 0
  %1328 = vmatprep.subr.bf16.mxu0 0
  %1329 = vmatpush2.bf16.xpose.msra.mxu0 0
  %1330 = vmatprep.subr.bf16.mxu0 0
  %1331 = vmatpush2.bf16.xpose.msra.mxu0 0
  %1332 = vmatprep.subr.bf16.mxu0 0
  %1333 = vmatpush2.bf16.xpose.msra.mxu0 0
  %1334 = vmatprep.subr.bf16.mxu0 0
  %1335 = vmatpush2.bf16.xpose.msra.mxu0 0
  %1336 = vmatprep.subr.bf16.mxu0 0
  %1337 = vmatpush2.bf16.xpose.msra.mxu0 0
  %1338 = vmatprep.mubr.bf16.mxu0 0
  %1339 = vmatmul.mubr.bf16.gmra.mxu0 %v1301
  %v1340 = vpop.f32.mrf.mxu0
  %v1341 = vadd.f32 %v50, %v1340
  %v1342 = vpop.f32.mrf.mxu0
  %v1343 = vpop.f32.mrf.mxu0
  %v1344 = vadd.f32 %v51, %v1343
  %v1345 = vpop.f32.mrf.mxu0
  %1346 = vdwg.mxu0
  %v1347 = vsel %vm436, %v1191, -inf
  %1348 = vmax.xlane.f32.xlu0 %v1347
  %v1349 = vpop.xlane.xlu0 %1348
  %v1350 = vsel %vm436, %v1194, -inf
  %1351 = vmax.xlane.f32.xlu0 %v1350
  %v1352 = vpop.xlane.xlu0 %1351
  %v1353 = vsel %vm436, %v1241, -inf
  %1354 = vmax.xlane.f32.xlu0 %v1353
  %v1355 = vpop.xlane.xlu0 %1354
  %v1356 = vsel %vm436, %v1244, -inf
  %1357 = vmax.xlane.f32.xlu0 %v1356
  %v1358 = vpop.xlane.xlu0 %1357
  %v1359 = vsel %vm436, %v1291, -inf
  %1360 = vmax.xlane.f32.xlu0 %v1359
  %v1361 = vpop.xlane.xlu0 %1360
  %v1362 = vsel %vm436, %v1294, -inf
  %1363 = vmax.xlane.f32.xlu0 %v1362
  %v1364 = vpop.xlane.xlu0 %1363
  %v1365 = vsel %vm436, %v1341, -inf
  %1366 = vmax.xlane.f32.xlu0 %v1365
  %v1367 = vpop.xlane.xlu0 %1366
  %v1368 = vsel %vm436, %v1344, -inf
  %1369 = vmax.xlane.f32.xlu0 %v1368
  %v1370 = vpop.xlane.xlu0 %1369
  %v1371 = vsub.f32 %v1191, %v1349
  %v1372 = vsub.f32 %v1194, %v1352
  %v1373 = vsub.f32 %v1241, %v1355
  %v1374 = vsub.f32 %v1244, %v1358
  %v1375 = vsub.f32 %v1291, %v1361
  %v1376 = vsub.f32 %v1294, %v1364
  %v1377 = vsub.f32 %v1341, %v1367
  %v1378 = vsub.f32 %v1344, %v1370
  %v1379 = vmul.f32 %v1371, 1.442695
  %v1380 = vpow.pop %v1379
  %v1381 = vmul.f32 %v1372, 1.442695
  %v1382 = vpow.pop %v1381
  %v1383 = vmul.f32 %v1373, 1.442695
  %v1384 = vpow.pop %v1383
  %v1385 = vmul.f32 %v1374, 1.442695
  %v1386 = vpow.pop %v1385
  %v1387 = vmul.f32 %v1375, 1.442695
  %v1388 = vpow.pop %v1387
  %v1389 = vmul.f32 %v1376, 1.442695
  %v1390 = vpow.pop %v1389
  %v1391 = vmul.f32 %v1377, 1.442695
  %v1392 = vpow.pop %v1391
  %v1393 = vmul.f32 %v1378, 1.442695
  %v1394 = vpow.pop %v1393
  %v1395 = vsel %vm436, %v1380, 0.0
  %1396 = vadd.xlane.f32.xlu0 %v1395
  %v1397 = vpop.xlane.xlu0 %1396
  %v1398 = vsel %vm436, %v1382, 0.0
  %1399 = vadd.xlane.f32.xlu0 %v1398
  %v1400 = vpop.xlane.xlu0 %1399
  %v1401 = vsel %vm436, %v1384, 0.0
  %1402 = vadd.xlane.f32.xlu0 %v1401
  %v1403 = vpop.xlane.xlu0 %1402
  %v1404 = vsel %vm436, %v1386, 0.0
  %1405 = vadd.xlane.f32.xlu0 %v1404
  %v1406 = vpop.xlane.xlu0 %1405
  %v1407 = vsel %vm436, %v1388, 0.0
  %1408 = vadd.xlane.f32.xlu0 %v1407
  %v1409 = vpop.xlane.xlu0 %1408
  %v1410 = vsel %vm436, %v1390, 0.0
  %1411 = vadd.xlane.f32.xlu0 %v1410
  %v1412 = vpop.xlane.xlu0 %1411
  %v1413 = vsel %vm436, %v1392, 0.0
  %1414 = vadd.xlane.f32.xlu0 %v1413
  %v1415 = vpop.xlane.xlu0 %1414
  %v1416 = vsel %vm436, %v1394, 0.0
  %1417 = vadd.xlane.f32.xlu0 %v1416
  %v1418 = vpop.xlane.xlu0 %1417
  %v1419 = vrcp.pop %v1397
  %v1420 = vrcp.pop %v1400
  %v1421 = vrcp.pop %v1403
  %v1422 = vrcp.pop %v1406
  %v1423 = vrcp.pop %v1409
  %v1424 = vrcp.pop %v1412
  %v1425 = vrcp.pop %v1415
  %v1426 = vrcp.pop %v1418
  %v1427 = vmul.f32 %v1380, %v1419
  %v1428 = vmul.f32 %v1382, %v1420
  %v1429 = vmul.f32 %v1384, %v1421
  %v1430 = vmul.f32 %v1386, %v1422
  %v1431 = vmul.f32 %v1388, %v1423
  %v1432 = vmul.f32 %v1390, %v1424
  %v1433 = vmul.f32 %v1392, %v1425
  %v1434 = vmul.f32 %v1394, %v1426
  %v1435 = vpack.c.bf16 %v1428, %v1427
  %v1436 = vpack.c.bf16 %v1430, %v1429
  %v1437 = vpack.c.bf16 %v1432, %v1431
  %v1438 = vpack.c.bf16 %v1434, %v1433
  %1439 = vrot.lane.b32.xlu0 %v1143, 64
  %v1440 = vpop.permute.xlu0 %1439
  %v1443 = vsel %vm436, %v1435, 0
  %1445 = vmatprep.subr.bf16.mxu0 0
  %1446 = vmatpush1.bf16.msra.mxu0 0
  %1447 = vmatprep.subr.bf16.mxu0 0
  %1448 = vmatpush1.bf16.msra.mxu0 0
  %1449 = vmatprep.subr.bf16.mxu0 0
  %1450 = vmatpush1.bf16.msra.mxu0 0
  %1451 = vmatprep.subr.bf16.mxu0 0
  %1452 = vmatpush1.bf16.msra.mxu0 0
  %1453 = vmatprep.subr.bf16.mxu0 0
  %1454 = vmatpush1.bf16.msra.mxu0 0
  %1455 = vmatprep.subr.bf16.mxu0 0
  %1456 = vmatpush1.bf16.msra.mxu0 0
  %1457 = vmatprep.subr.bf16.mxu0 0
  %1458 = vmatpush1.bf16.msra.mxu0 0
  %1459 = vmatprep.subr.bf16.mxu0 0
  %1460 = vmatpush1.bf16.msra.mxu0 %v1440
  %1461 = vmatprep.subr.bf16.mxu0 0
  %1462 = vmatpush2.bf16.msra.mxu0 0
  %1463 = vmatprep.subr.bf16.mxu0 0
  %1464 = vmatpush2.bf16.msra.mxu0 0
  %1465 = vmatprep.subr.bf16.mxu0 0
  %1466 = vmatpush2.bf16.msra.mxu0 0
  %1467 = vmatprep.subr.bf16.mxu0 0
  %1468 = vmatpush2.bf16.msra.mxu0 0
  %1469 = vmatprep.subr.bf16.mxu0 0
  %1470 = vmatpush2.bf16.msra.mxu0 0
  %1471 = vmatprep.subr.bf16.mxu0 0
  %1472 = vmatpush2.bf16.msra.mxu0 0
  %1473 = vmatprep.subr.bf16.mxu0 0
  %1474 = vmatpush2.bf16.msra.mxu0 0
  %1475 = vmatprep.subr.bf16.mxu0 0
  %1476 = vmatpush2.bf16.msra.mxu0 0
  %1477 = vmatprep.mubr.bf16.mxu0 0
  %1478 = vmatmul.mubr.bf16.gmra.mxu0 %v1443
  %v1479 = vpop.f32.mrf.mxu0
  %v1480 = vadd.f32 0.0, %v1479
  %v1481 = vpop.f32.mrf.mxu0
  %v1482 = vpop.f32.mrf.mxu0
  %v1483 = vadd.f32 0.0, %v1482
  %v1484 = vpop.f32.mrf.mxu0
  %1485 = vdwg.mxu0
  %1486 = vrot.lane.b32.xlu0 %v1144, 64
  %v1487 = vpop.permute.xlu0 %1486
  %v1490 = vsel %vm436, %v1436, 0
  %1492 = vmatprep.subr.bf16.mxu0 0
  %1493 = vmatpush1.bf16.msra.mxu0 0
  %1494 = vmatprep.subr.bf16.mxu0 0
  %1495 = vmatpush1.bf16.msra.mxu0 0
  %1496 = vmatprep.subr.bf16.mxu0 0
  %1497 = vmatpush1.bf16.msra.mxu0 0
  %1498 = vmatprep.subr.bf16.mxu0 0
  %1499 = vmatpush1.bf16.msra.mxu0 0
  %1500 = vmatprep.subr.bf16.mxu0 0
  %1501 = vmatpush1.bf16.msra.mxu0 0
  %1502 = vmatprep.subr.bf16.mxu0 0
  %1503 = vmatpush1.bf16.msra.mxu0 0
  %1504 = vmatprep.subr.bf16.mxu0 0
  %1505 = vmatpush1.bf16.msra.mxu0 0
  %1506 = vmatprep.subr.bf16.mxu0 0
  %1507 = vmatpush1.bf16.msra.mxu0 %v1487
  %1508 = vmatprep.subr.bf16.mxu0 0
  %1509 = vmatpush2.bf16.msra.mxu0 0
  %1510 = vmatprep.subr.bf16.mxu0 0
  %1511 = vmatpush2.bf16.msra.mxu0 0
  %1512 = vmatprep.subr.bf16.mxu0 0
  %1513 = vmatpush2.bf16.msra.mxu0 0
  %1514 = vmatprep.subr.bf16.mxu0 0
  %1515 = vmatpush2.bf16.msra.mxu0 0
  %1516 = vmatprep.subr.bf16.mxu0 0
  %1517 = vmatpush2.bf16.msra.mxu0 0
  %1518 = vmatprep.subr.bf16.mxu0 0
  %1519 = vmatpush2.bf16.msra.mxu0 0
  %1520 = vmatprep.subr.bf16.mxu0 0
  %1521 = vmatpush2.bf16.msra.mxu0 0
  %1522 = vmatprep.subr.bf16.mxu0 0
  %1523 = vmatpush2.bf16.msra.mxu0 0
  %1524 = vmatprep.mubr.bf16.mxu0 0
  %1525 = vmatmul.mubr.bf16.gmra.mxu0 %v1490
  %v1526 = vpop.f32.mrf.mxu0
  %v1527 = vadd.f32 0.0, %v1526
  %v1528 = vpop.f32.mrf.mxu0
  %v1529 = vpop.f32.mrf.mxu0
  %v1530 = vadd.f32 0.0, %v1529
  %v1531 = vpop.f32.mrf.mxu0
  %1532 = vdwg.mxu0
  %1533 = vrot.lane.b32.xlu0 %v1145, 64
  %v1534 = vpop.permute.xlu0 %1533
  %v1537 = vsel %vm436, %v1437, 0
  %1539 = vmatprep.subr.bf16.mxu0 0
  %1540 = vmatpush1.bf16.msra.mxu0 0
  %1541 = vmatprep.subr.bf16.mxu0 0
  %1542 = vmatpush1.bf16.msra.mxu0 0
  %1543 = vmatprep.subr.bf16.mxu0 0
  %1544 = vmatpush1.bf16.msra.mxu0 0
  %1545 = vmatprep.subr.bf16.mxu0 0
  %1546 = vmatpush1.bf16.msra.mxu0 0
  %1547 = vmatprep.subr.bf16.mxu0 0
  %1548 = vmatpush1.bf16.msra.mxu0 0
  %1549 = vmatprep.subr.bf16.mxu0 0
  %1550 = vmatpush1.bf16.msra.mxu0 0
  %1551 = vmatprep.subr.bf16.mxu0 0
  %1552 = vmatpush1.bf16.msra.mxu0 0
  %1553 = vmatprep.subr.bf16.mxu0 0
  %1554 = vmatpush1.bf16.msra.mxu0 %v1534
  %1555 = vmatprep.subr.bf16.mxu0 0
  %1556 = vmatpush2.bf16.msra.mxu0 0
  %1557 = vmatprep.subr.bf16.mxu0 0
  %1558 = vmatpush2.bf16.msra.mxu0 0
  %1559 = vmatprep.subr.bf16.mxu0 0
  %1560 = vmatpush2.bf16.msra.mxu0 0
  %1561 = vmatprep.subr.bf16.mxu0 0
  %1562 = vmatpush2.bf16.msra.mxu0 0
  %1563 = vmatprep.subr.bf16.mxu0 0
  %1564 = vmatpush2.bf16.msra.mxu0 0
  %1565 = vmatprep.subr.bf16.mxu0 0
  %1566 = vmatpush2.bf16.msra.mxu0 0
  %1567 = vmatprep.subr.bf16.mxu0 0
  %1568 = vmatpush2.bf16.msra.mxu0 0
  %1569 = vmatprep.subr.bf16.mxu0 0
  %1570 = vmatpush2.bf16.msra.mxu0 0
  %1571 = vmatprep.mubr.bf16.mxu0 0
  %1572 = vmatmul.mubr.bf16.gmra.mxu0 %v1537
  %v1573 = vpop.f32.mrf.mxu0
  %v1574 = vadd.f32 0.0, %v1573
  %v1575 = vpop.f32.mrf.mxu0
  %v1576 = vpop.f32.mrf.mxu0
  %v1577 = vadd.f32 0.0, %v1576
  %v1578 = vpop.f32.mrf.mxu0
  %1579 = vdwg.mxu0
  %1580 = vrot.lane.b32.xlu0 %v1146, 64
  %v1581 = vpop.permute.xlu0 %1580
  %v1584 = vsel %vm436, %v1438, 0
  %1586 = vmatprep.subr.bf16.mxu0 0
  %1587 = vmatpush1.bf16.msra.mxu0 0
  %1588 = vmatprep.subr.bf16.mxu0 0
  %1589 = vmatpush1.bf16.msra.mxu0 0
  %1590 = vmatprep.subr.bf16.mxu0 0
  %1591 = vmatpush1.bf16.msra.mxu0 0
  %1592 = vmatprep.subr.bf16.mxu0 0
  %1593 = vmatpush1.bf16.msra.mxu0 0
  %1594 = vmatprep.subr.bf16.mxu0 0
  %1595 = vmatpush1.bf16.msra.mxu0 0
  %1596 = vmatprep.subr.bf16.mxu0 0
  %1597 = vmatpush1.bf16.msra.mxu0 0
  %1598 = vmatprep.subr.bf16.mxu0 0
  %1599 = vmatpush1.bf16.msra.mxu0 0
  %1600 = vmatprep.subr.bf16.mxu0 0
  %1601 = vmatpush1.bf16.msra.mxu0 %v1581
  %1602 = vmatprep.subr.bf16.mxu0 0
  %1603 = vmatpush2.bf16.msra.mxu0 0
  %1604 = vmatprep.subr.bf16.mxu0 0
  %1605 = vmatpush2.bf16.msra.mxu0 0
  %1606 = vmatprep.subr.bf16.mxu0 0
  %1607 = vmatpush2.bf16.msra.mxu0 0
  %1608 = vmatprep.subr.bf16.mxu0 0
  %1609 = vmatpush2.bf16.msra.mxu0 0
  %1610 = vmatprep.subr.bf16.mxu0 0
  %1611 = vmatpush2.bf16.msra.mxu0 0
  %1612 = vmatprep.subr.bf16.mxu0 0
  %1613 = vmatpush2.bf16.msra.mxu0 0
  %1614 = vmatprep.subr.bf16.mxu0 0
  %1615 = vmatpush2.bf16.msra.mxu0 0
  %1616 = vmatprep.subr.bf16.mxu0 0
  %1617 = vmatpush2.bf16.msra.mxu0 0
  %1618 = vmatprep.mubr.bf16.mxu0 0
  %1619 = vmatmul.mubr.bf16.gmra.mxu0 %v1584
  %v1620 = vpop.f32.mrf.mxu0
  %v1621 = vadd.f32 0.0, %v1620
  %v1622 = vpop.f32.mrf.mxu0
  %v1623 = vpop.f32.mrf.mxu0
  %v1624 = vadd.f32 0.0, %v1623
  %v1625 = vpop.f32.mrf.mxu0
  %1626 = vdwg.mxu0
  %1629 = vrot.lane.b32.xlu0 %v1527, 8
  %v1630 = vpop.permute.xlu0 %1629
  %1631 = vrot.lane.b32.xlu0 %v1530, 8
  %v1632 = vpop.permute.xlu0 %1631
  %1637 = vrot.lane.b32.xlu0 %v1574, 16
  %v1638 = vpop.permute.xlu0 %1637
  %1639 = vrot.lane.b32.xlu0 %v1577, 16
  %v1640 = vpop.permute.xlu0 %1639
  %1645 = vrot.lane.b32.xlu0 %v1621, 24
  %v1646 = vpop.permute.xlu0 %1645
  %1647 = vrot.lane.b32.xlu0 %v1624, 24
  %v1648 = vpop.permute.xlu0 %1647
  %v1651 = vsel %vm238, %v1480, %v1630
  %v1652 = vsel %vm238, %v1483, %v1632
  %v1653 = vsel %vm436, %v1651, %v1638
  %v1654 = vsel %vm436, %v1652, %v1640
  %v1655 = vsel %vm745, %v1653, %v1646
  %v1656 = vsel %vm745, %v1654, %v1648
  %v1657 = vpack.c.bf16 %v1656, %v1655
  %s1658 = scalar_lea.vmem %s7, 16
  %v1659 = vld [vmem:[%s1658] sm:$0xf]
  %v1660 = vld [vmem:[%s1658 + $0x4] sm:$0xf]
  %v1661 = vld [vmem:[%s1658 + $0x8] sm:$0xf]
  %v1662 = vld [vmem:[%s1658 + $0xc] sm:$0xf]
  %s1663 = scalar_lea.vmem %s8, 1
  %v1664 = vld [vmem:[%s1663] sm:$0x1]
  %v1666 = vlaneseq
  %v1667 = vshrl.u32 %v1666, 7
  %v1668 = vsub.s32 0, %v1667
  %v1669 = vrot.slane %v1664, %v1668
  %v1675 = vunpack.c.l.b16 %v1659
  %v1676 = vunpack.c.l.b16 %v1660
  %v1677 = vunpack.c.l.b16 %v1661
  %v1678 = vunpack.c.l.b16 %v1662
  %v1679 = vpack.c.b16 %v1676, %v1675
  %v1680 = vpack.c.b16 %v1678, %v1677
  %v1684 = vsel %vm52, %v1657, 0
  %1686 = vmatprep.subr.bf16.mxu0 0
  %1687 = vmatpush1.bf16.msra.mxu0 0
  %1688 = vmatprep.subr.bf16.mxu0 0
  %1689 = vmatpush1.bf16.msra.mxu0 0
  %1690 = vmatprep.subr.bf16.mxu0 0
  %1691 = vmatpush1.bf16.msra.mxu0 0
  %1692 = vmatprep.subr.bf16.mxu0 0
  %1693 = vmatpush1.bf16.msra.mxu0 0
  %1694 = vmatprep.subr.bf16.mxu0 0
  %1695 = vmatpush1.bf16.msra.mxu0 0
  %1696 = vmatprep.subr.bf16.mxu0 0
  %1697 = vmatpush1.bf16.msra.mxu0 0
  %1698 = vmatprep.subr.bf16.mxu0 0
  %1699 = vmatpush1.bf16.msra.mxu0 %v1680
  %1700 = vmatprep.subr.bf16.mxu0 0
  %1701 = vmatpush1.bf16.msra.mxu0 %v1679
  %1702 = vmatprep.subr.bf16.mxu0 0
  %1703 = vmatpush2.bf16.msra.mxu0 0
  %1704 = vmatprep.subr.bf16.mxu0 0
  %1705 = vmatpush2.bf16.msra.mxu0 0
  %1706 = vmatprep.subr.bf16.mxu0 0
  %1707 = vmatpush2.bf16.msra.mxu0 0
  %1708 = vmatprep.subr.bf16.mxu0 0
  %1709 = vmatpush2.bf16.msra.mxu0 0
  %1710 = vmatprep.subr.bf16.mxu0 0
  %1711 = vmatpush2.bf16.msra.mxu0 0
  %1712 = vmatprep.subr.bf16.mxu0 0
  %1713 = vmatpush2.bf16.msra.mxu0 0
  %1714 = vmatprep.subr.bf16.mxu0 0
  %1715 = vmatpush2.bf16.msra.mxu0 0
  %1716 = vmatprep.subr.bf16.mxu0 0
  %1717 = vmatpush2.bf16.msra.mxu0 0
  %1718 = vmatprep.mubr.bf16.mxu0 0
  %1719 = vmatmul.mubr.bf16.gmra.mxu0 %v1684
  %v1720 = vpop.f32.mrf.mxu0
  %v1721 = vadd.f32 %v1669, %v1720
  %v1722 = vpop.f32.mrf.mxu0
  %v1723 = vpop.f32.mrf.mxu0
  %v1724 = vadd.f32 %v1669, %v1723
  %v1725 = vpop.f32.mrf.mxu0
  %1726 = vdwg.mxu0
  %v1727 = vadd.f32 %v1011, %v1721
  %v1728 = vadd.f32 %v1012, %v1724
  %v1729 = vsel %vm52, %v1727, 0.0
  %1730 = vadd.xlane.f32.xlu0 %v1729
  %v1731 = vpop.xlane.xlu0 %1730
  %v1732 = vsel %vm52, %v1728, 0.0
  %1733 = vadd.xlane.f32.xlu0 %v1732
  %v1734 = vpop.xlane.xlu0 %1733
  %v1735 = vmul.f32 %v1731, %v59
  %v1736 = vmul.f32 %v1734, %v59
  %v1737 = vsub.f32 %v1727, %v1735
  %v1738 = vsub.f32 %v1728, %v1736
  %v1739 = vmul.f32 %v1737, %v1737
  %v1740 = vmul.f32 %v1738, %v1738
  %v1741 = vsel %vm52, %v1739, 0.0
  %1742 = vadd.xlane.f32.xlu0 %v1741
  %v1743 = vpop.xlane.xlu0 %1742
  %v1744 = vsel %vm52, %v1740, 0.0
  %1745 = vadd.xlane.f32.xlu0 %v1744
  %v1746 = vpop.xlane.xlu0 %1745
  %v1747 = vmul.f32 %v1743, %v59
  %v1748 = vmul.f32 %v1746, %v59
  %v1749 = vadd.f32 %v1747, 1e-05
  %v1750 = vadd.f32 %v1748, 1e-05
  %v1751 = vrsqrt.pop %v1749
  %v1752 = vrsqrt.pop %v1750
  %v1753 = vmul.f32 %v1737, %v1751
  %v1754 = vmul.f32 %v1738, %v1752
  %v1755 = vlaneseq
  %v1756 = vshrl.u32 %v1755, 7
  %v1757 = vsub.s32 2, %v1756
  %v1758 = vrot.slane %v1014, %v1757
  %v1759 = vmul.f32 %v1753, %v1758
  %v1760 = vmul.f32 %v1754, %v1758
  %v1761 = vlaneseq
  %v1762 = vshrl.u32 %v1761, 7
  %v1763 = vsub.s32 3, %v1762
  %v1764 = vrot.slane %v1014, %v1763
  %v1765 = vadd.f32 %v1759, %v1764
  %v1766 = vadd.f32 %v1760, %v1764
  %v1767 = vpack.c.bf16 %v1766, %v1765
  %s1768 = scalar_lea.vmem %s9, 16
  %v1769 = vld [vmem:[%s1768] sm:$0xf]
  %v1770 = vld [vmem:[%s1768 + $0x4] sm:$0xf]
  %v1771 = vld [vmem:[%s1768 + $0x8] sm:$0xf]
  %v1772 = vld [vmem:[%s1768 + $0xc] sm:$0xf]
  %s1773 = scalar_lea.vmem %s10, 1
  %v1774 = vld [vmem:[%s1773] sm:$0x1]
  %v1776 = vlaneseq
  %v1777 = vshrl.u32 %v1776, 7
  %v1778 = vsub.s32 0, %v1777
  %v1779 = vrot.slane %v1774, %v1778
  %v1785 = vunpack.c.l.b16 %v1769
  %v1786 = vunpack.c.l.b16 %v1770
  %v1787 = vunpack.c.l.b16 %v1771
  %v1788 = vunpack.c.l.b16 %v1772
  %v1789 = vpack.c.b16 %v1786, %v1785
  %v1790 = vpack.c.b16 %v1788, %v1787
  %v1794 = vsel %vm52, %v1767, 0
  %1796 = vmatprep.subr.bf16.mxu0 0
  %1797 = vmatpush1.bf16.msra.mxu0 0
  %1798 = vmatprep.subr.bf16.mxu0 0
  %1799 = vmatpush1.bf16.msra.mxu0 0
  %1800 = vmatprep.subr.bf16.mxu0 0
  %1801 = vmatpush1.bf16.msra.mxu0 0
  %1802 = vmatprep.subr.bf16.mxu0 0
  %1803 = vmatpush1.bf16.msra.mxu0 0
  %1804 = vmatprep.subr.bf16.mxu0 0
  %1805 = vmatpush1.bf16.msra.mxu0 0
  %1806 = vmatprep.subr.bf16.mxu0 0
  %1807 = vmatpush1.bf16.msra.mxu0 0
  %1808 = vmatprep.subr.bf16.mxu0 0
  %1809 = vmatpush1.bf16.msra.mxu0 %v1790
  %1810 = vmatprep.subr.bf16.mxu0 0
  %1811 = vmatpush1.bf16.msra.mxu0 %v1789
  %1812 = vmatprep.subr.bf16.mxu0 0
  %1813 = vmatpush2.bf16.msra.mxu0 0
  %1814 = vmatprep.subr.bf16.mxu0 0
  %1815 = vmatpush2.bf16.msra.mxu0 0
  %1816 = vmatprep.subr.bf16.mxu0 0
  %1817 = vmatpush2.bf16.msra.mxu0 0
  %1818 = vmatprep.subr.bf16.mxu0 0
  %1819 = vmatpush2.bf16.msra.mxu0 0
  %1820 = vmatprep.subr.bf16.mxu0 0
  %1821 = vmatpush2.bf16.msra.mxu0 0
  %1822 = vmatprep.subr.bf16.mxu0 0
  %1823 = vmatpush2.bf16.msra.mxu0 0
  %1824 = vmatprep.subr.bf16.mxu0 0
  %1825 = vmatpush2.bf16.msra.mxu0 0
  %1826 = vmatprep.subr.bf16.mxu0 0
  %1827 = vmatpush2.bf16.msra.mxu0 0
  %1828 = vmatprep.mubr.bf16.mxu0 0
  %1829 = vmatmul.mubr.bf16.gmra.mxu0 %v1794
  %v1830 = vpop.f32.mrf.mxu0
  %v1831 = vadd.f32 %v1779, %v1830
  %v1832 = vpop.f32.mrf.mxu0
  %v1833 = vpop.f32.mrf.mxu0
  %v1834 = vadd.f32 %v1779, %v1833
  %v1835 = vpop.f32.mrf.mxu0
  %1836 = vdwg.mxu0
  %v1837 = vmax.f32 %v1831, 0.0
  %v1838 = vmax.f32 %v1834, 0.0
  %v1839 = vpack.c.bf16 %v1838, %v1837
  %s1840 = scalar_lea.vmem %s11, 32
  %v1841 = vld [vmem:[%s1840] sm:$0xf]
  %v1842 = vld [vmem:[%s1840 + $0x4] sm:$0xf]
  %v1843 = vld [vmem:[%s1840 + $0x8] sm:$0xf]
  %v1844 = vld [vmem:[%s1840 + $0xc] sm:$0xf]
  %v1845 = vld [vmem:[%s1840 + $0x10] sm:$0xf]
  %v1846 = vld [vmem:[%s1840 + $0x14] sm:$0xf]
  %v1847 = vld [vmem:[%s1840 + $0x18] sm:$0xf]
  %v1848 = vld [vmem:[%s1840 + $0x1c] sm:$0xf]
  %s1849 = scalar_lea.vmem %s12, 1
  %v1850 = vld [vmem:[%s1849] sm:$0x1]
  %v1852 = vlaneseq
  %v1853 = vshrl.u32 %v1852, 7
  %v1854 = vsub.s32 0, %v1853
  %v1855 = vrot.slane %v1850, %v1854
  %v1865 = vunpack.c.l.b16 %v1841
  %v1866 = vunpack.c.l.b16 %v1842
  %v1867 = vunpack.c.l.b16 %v1843
  %v1868 = vunpack.c.l.b16 %v1844
  %v1869 = vunpack.c.l.b16 %v1845
  %v1870 = vunpack.c.l.b16 %v1846
  %v1871 = vunpack.c.l.b16 %v1847
  %v1872 = vunpack.c.l.b16 %v1848
  %v1873 = vpack.c.b16 %v1866, %v1865
  %v1874 = vpack.c.b16 %v1868, %v1867
  %v1875 = vpack.c.b16 %v1870, %v1869
  %v1876 = vpack.c.b16 %v1872, %v1871
  %v1882 = vsel %vm966, %v1839, 0
  %1884 = vmatprep.subr.bf16.mxu0 0
  %1885 = vmatpush1.bf16.msra.mxu0 0
  %1886 = vmatprep.subr.bf16.mxu0 0
  %1887 = vmatpush1.bf16.msra.mxu0 0
  %1888 = vmatprep.subr.bf16.mxu0 0
  %1889 = vmatpush1.bf16.msra.mxu0 0
  %1890 = vmatprep.subr.bf16.mxu0 0
  %1891 = vmatpush1.bf16.msra.mxu0 0
  %1892 = vmatprep.subr.bf16.mxu0 0
  %1893 = vmatpush1.bf16.msra.mxu0 %v1876
  %1894 = vmatprep.subr.bf16.mxu0 0
  %1895 = vmatpush1.bf16.msra.mxu0 %v1875
  %1896 = vmatprep.subr.bf16.mxu0 0
  %1897 = vmatpush1.bf16.msra.mxu0 %v1874
  %1898 = vmatprep.subr.bf16.mxu0 0
  %1899 = vmatpush1.bf16.msra.mxu0 %v1873
  %1900 = vmatprep.subr.bf16.mxu0 0
  %1901 = vmatpush2.bf16.msra.mxu0 0
  %1902 = vmatprep.subr.bf16.mxu0 0
  %1903 = vmatpush2.bf16.msra.mxu0 0
  %1904 = vmatprep.subr.bf16.mxu0 0
  %1905 = vmatpush2.bf16.msra.mxu0 0
  %1906 = vmatprep.subr.bf16.mxu0 0
  %1907 = vmatpush2.bf16.msra.mxu0 0
  %1908 = vmatprep.subr.bf16.mxu0 0
  %1909 = vmatpush2.bf16.msra.mxu0 0
  %1910 = vmatprep.subr.bf16.mxu0 0
  %1911 = vmatpush2.bf16.msra.mxu0 0
  %1912 = vmatprep.subr.bf16.mxu0 0
  %1913 = vmatpush2.bf16.msra.mxu0 0
  %1914 = vmatprep.subr.bf16.mxu0 0
  %1915 = vmatpush2.bf16.msra.mxu0 0
  %1916 = vmatprep.mubr.bf16.mxu0 0
  %1917 = vmatmul.mubr.bf16.gmra.mxu0 %v1882
  %v1918 = vpop.f32.mrf.mxu0
  %v1919 = vadd.f32 %v1855, %v1918
  %v1920 = vpop.f32.mrf.mxu0
  %v1921 = vpop.f32.mrf.mxu0
  %v1922 = vadd.f32 %v1855, %v1921
  %v1923 = vpop.f32.mrf.mxu0
  %1924 = vdwg.mxu0
  %v1925 = vadd.f32 %v1727, %v1919
  %v1926 = vadd.f32 %v1728, %v1922
  %v1927 = vsel %vm52, %v1925, 0.0
  %1928 = vadd.xlane.f32.xlu0 %v1927
  %v1929 = vpop.xlane.xlu0 %1928
  %v1930 = vsel %vm52, %v1926, 0.0
  %1931 = vadd.xlane.f32.xlu0 %v1930
  %v1932 = vpop.xlane.xlu0 %1931
  %v1933 = vmul.f32 %v1929, %v59
  %v1934 = vmul.f32 %v1932, %v59
  %v1935 = vsub.f32 %v1925, %v1933
  %v1936 = vsub.f32 %v1926, %v1934
  %v1937 = vmul.f32 %v1935, %v1935
  %v1938 = vmul.f32 %v1936, %v1936
  %v1939 = vsel %vm52, %v1937, 0.0
  %1940 = vadd.xlane.f32.xlu0 %v1939
  %v1941 = vpop.xlane.xlu0 %1940
  %v1942 = vsel %vm52, %v1938, 0.0
  %1943 = vadd.xlane.f32.xlu0 %v1942
  %v1944 = vpop.xlane.xlu0 %1943
  %v1945 = vmul.f32 %v1941, %v59
  %v1946 = vmul.f32 %v1944, %v59
  %v1947 = vadd.f32 %v1945, 1e-05
  %v1948 = vadd.f32 %v1946, 1e-05
  %v1949 = vrsqrt.pop %v1947
  %v1950 = vrsqrt.pop %v1948
  %v1951 = vmul.f32 %v1935, %v1949
  %v1952 = vmul.f32 %v1936, %v1950
  %v1953 = vlaneseq
  %v1954 = vshrl.u32 %v1953, 7
  %v1955 = vsub.s32 2, %v1954
  %v1956 = vrot.slane %v49, %v1955
  %v1957 = vmul.f32 %v1951, %v1956
  %v1958 = vmul.f32 %v1952, %v1956
  %v1959 = vlaneseq
  %v1960 = vshrl.u32 %v1959, 7
  %v1961 = vsub.s32 3, %v1960
  %v1962 = vrot.slane %v49, %v1961
  %v1963 = vadd.f32 %v1957, %v1962
  %v1964 = vadd.f32 %v1958, %v1962
  %1965 = vst.msk [vmem:[%s13] sm:$0xff] %vm52, %v1963
  %1966 = vst.msk [vmem:[%s13 + $0x8] sm:$0xff] %vm52, %v1964
  // Predicated region
  $region54: #{transformer_encoder_forward.1} parent=0 // pred_check
    _
  $region55: #{transformer_encoder_forward.1} parent=0 // pred_check_branch
    %1968 = sbr.rel (0) target = $region57
  $region56: #{transformer_encoder_forward.1} parent=0 // pred_region
    _
  $region57: #{transformer_encoder_forward.1} parent=0 // pred_fallthru
    _
  // Predicated region
  $region58: #{transformer_encoder_forward.1} parent=0 // pred_check
    _
  $region59: #{transformer_encoder_forward.1} parent=0 // pred_check_branch
    %1970 = sbr.rel (0) target = $region61
  $region60: #{transformer_encoder_forward.1} parent=0 // pred_region
    _
  $region61: #{transformer_encoder_forward.1} parent=0 // pred_fallthru
    _

</llo_original>
